<compile_context>
chip_gen: v7x
topology: tpu7x:2x2x1
jax: 0.10.0
libtpu: 0.0.40
codegen_flags: <defaults>
</compile_context>

<pallas_src>
import functools

import jax
import jax.numpy as jnp
from jax.experimental import pallas as pl
from jax.experimental.pallas import tpu as pltpu

N_BLADES = 8  # 2**3 blades for CliffordAlgebra((1, 1, 1))


def _round_up(x, m):
    return ((x + m - 1) // m) * m


def _round_down(x, m):
    return (x // m) * m


def _mvact_kernel(x_ref, w1_ref, w2_ref, o_ref, k_scr, *, lane_chunk):
    """x_ref/o_ref: (8, F, TB); w*_ref: (F, F); k_scr: (8, F, lane_chunk) f32."""
    _, F, TB = x_ref.shape
    TC = lane_chunk
    num_chunks = TB // TC

    w1 = w1_ref[...]
    w2 = w2_ref[...]

    @pl.loop(0, num_chunks)
    def _(c):
        base = pl.multiple_of(c * TC, 128)
        sl = pl.ds(base, TC)

        # Pass 1: per-blade matmuls.  q streams straight into o_ref, k into a
        # small VMEM scratch; qk / k_sq accumulate in registers.  Working set
        # per blade iteration is ~5 (F, TC) slabs, sized to fit in 64 vregs.
        qk = jnp.zeros((F, TC), jnp.float32)
        ksq = jnp.zeros((F, TC), jnp.float32)
        for i in range(N_BLADES):
            xi = x_ref[i, :, sl].astype(w1.dtype)
            qi = jnp.dot(w1, xi, preferred_element_type=jnp.float32)
            ki = jnp.dot(w2, xi, preferred_element_type=jnp.float32)
            o_ref[i, :, sl] = qi.astype(o_ref.dtype)
            k_scr[i] = ki
            qk = qk + qi * ki
            ksq = ksq + ki * ki

        # inv = qk / k_sq via EUP approximate reciprocal + one Newton step
        # (restores ~f32 accuracy; EUP slot is otherwise idle here).
        r = pl.reciprocal(ksq, approx=True)
        r = r * (2.0 - ksq * r)
        # Single select for the gate: coef = 0 where qk > 0, else inv.
        coef = jnp.where(qk > 0.0, 0.0, qk * r)

        # Pass 2: out = q - coef * k   (mul + sub per blade, no per-blade select).
        for i in range(N_BLADES):
            o_ref[i, :, sl] = (o_ref[i, :, sl].astype(jnp.float32)
                               - coef * k_scr[i]).astype(o_ref.dtype)


def _pick_tiles(B, F, itemsize, batch_tile, lane_chunk, target_vmem_bytes):
    """Pick (batch_tile, lane_chunk): lane-dense batch tile from a VMEM budget."""
    b128 = _round_up(max(B, 1), 128)

    if batch_tile is None:
        # Double-buffered input + output blocks dominate VMEM usage.
        per_lane = 2 * 2 * N_BLADES * F * itemsize
        tb = _round_down(max(target_vmem_bytes // per_lane, 128), 128)
        tb = max(128, min(tb, 8192))
        tb = min(tb, b128)
        # Prefer >= 2 grid tiles so ("parallel",) can feed both TCs (v7x).
        if b128 >= 256 and b128 <= tb:
            tb = _round_up(-(-b128 // 2), 128)
    else:
        assert batch_tile % 128 == 0
        tb = batch_tile

    if lane_chunk is None:
        # Epilogue / matmul chunk: keep F * TC around 8K f32 (~8 vregs/slab).
        tc = _round_down(max(8192 // max(F, 1), 128), 128)
    else:
        assert lane_chunk % 128 == 0
        tc = lane_chunk
    tc = min(tc, tb)
    while tb % tc:           # both are multiples of 128, terminates at tc=128
        tc -= 128
    return tb, tc


@functools.partial(
    jax.jit,
    static_argnames=("batch_tile", "lane_chunk", "target_vmem_bytes",
                     "vmem_limit_bytes"))
def mvact_blades_major(xt, w1, w2, *, batch_tile=None, lane_chunk=None,
                       target_vmem_bytes=32 * 1024 * 1024,
                       vmem_limit_bytes=None):
    """MVAct on activations already in kernel layout (zero-transpose path).

    xt: (8, F, B) -- blades major, channels on sublanes, batch on lanes.
    Returns (8, F, B).  Keep activations in this layout across layers to avoid
    the (B, F, 8) <-> (8, F, B) transposes, which are full HBM passes and
    roughly triple traffic for this memory-bound op.
    """
    blades, F, B = xt.shape
    assert blades == N_BLADES
    assert w1.shape == (F, F) and w2.shape == (F, F)

    itemsize = jnp.dtype(xt.dtype).itemsize
    tb, tc = _pick_tiles(B, F, itemsize, batch_tile, lane_chunk,
                         target_vmem_bytes)
    bp = _round_up(B, tb)
    if bp != B:
        # Padded lanes see k_sq == 0 and produce NaN internally; they are
        # sliced off before returning (harmless, documented divergence).
        xt = jnp.pad(xt, ((0, 0), (0, 0), (0, bp - B)))

    if vmem_limit_bytes is None:
        est = (2 * 2 * N_BLADES * F * tb * itemsize      # dbl-buffered in+out
               + N_BLADES * F * tc * 4                   # k scratch
               + 2 * 2 * F * F * jnp.dtype(w1.dtype).itemsize)  # weights
        vmem_limit_bytes = int(min(max(est * 5 // 4, 32 << 20), 96 << 20))

    kernel = functools.partial(_mvact_kernel, lane_chunk=tc)
    out = pl.pallas_call(
        kernel,
        out_shape=jax.ShapeDtypeStruct((N_BLADES, F, bp), xt.dtype),
        grid_spec=pltpu.PrefetchScalarGridSpec(
            num_scalar_prefetch=0,
            grid=(bp // tb,),
            in_specs=[
                pl.BlockSpec((N_BLADES, F, tb), lambda b: (0, 0, b)),
                # Constant index_map -> weights stay resident in VMEM.
                pl.BlockSpec((F, F), lambda b: (0, 0)),
                pl.BlockSpec((F, F), lambda b: (0, 0)),
            ],
            out_specs=pl.BlockSpec((N_BLADES, F, tb), lambda b: (0, 0, b)),
            scratch_shapes=[pltpu.VMEM((N_BLADES, F, tc), jnp.float32)],
        ),
        compiler_params=pltpu.CompilerParams(
            dimension_semantics=("parallel",),   # shard batch tiles across TCs
            vmem_limit_bytes=vmem_limit_bytes,   # v5e scoped default is 16 MiB
        ),
    )(xt, w1, w2)

    return out[:, :, :B]


@functools.partial(
    jax.jit,
    static_argnames=("batch_tile", "lane_chunk", "target_vmem_bytes",
                     "vmem_limit_bytes"))
def mvact(x, w1, w2, *, batch_tile=None, lane_chunk=None,
          target_vmem_bytes=32 * 1024 * 1024, vmem_limit_bytes=None):
    """PyTorch-layout compatibility entry: x (B, F, 8) -> (B, F, 8).

    NOTE: the two transposes below are layout plumbing only (full HBM passes in
    XLA).  Inside a network, prefer mvact_blades_major() and keep activations
    in (8, F, B) layout across layers.
    """
    B, F, blades = x.shape
    assert blades == N_BLADES
    xt = jnp.transpose(x, (2, 1, 0))
    out_t = mvact_blades_major(
        xt, w1, w2, batch_tile=batch_tile, lane_chunk=lane_chunk,
        target_vmem_bytes=target_vmem_bytes, vmem_limit_bytes=vmem_limit_bytes)
    return jnp.transpose(out_t, (2, 1, 0))


def mvact_ref(x, w1, w2):
    """Pure-JAX reference mirroring the PyTorch forward (blend form)."""
    q = jnp.einsum("bmi,nm->bni", x, w1, precision="highest")
    k = jnp.einsum("bmi,nm->bni", x, w2, precision="highest")
    qk = jnp.sum(q * k, axis=-1)
    k_sq = jnp.sum(k * k, axis=-1)
    inv = qk / k_sq
    c1 = q
    c2 = q - inv[..., None] * k
    gate = jnp.maximum(jnp.sign(qk)[..., None], 0.0)
    return gate * c1 + (1.0 - gate) * c2


if __name__ == "__main__":
    B, F = 4, 16  # batch, features_v ; blade dim fixed at 8

    key = jax.random.PRNGKey(0)
    kx, k1, k2 = jax.random.split(key, 3)

    x = jax.random.normal(kx, (B, F, N_BLADES), dtype=jnp.float32)
    # MVLinear-style init: normal with std = 1/sqrt(in_features)
    w1 = jax.random.normal(k1, (F, F), dtype=jnp.float32) / jnp.sqrt(F)
    w2 = jax.random.normal(k2, (F, F), dtype=jnp.float32) / jnp.sqrt(F)

    out = jax.block_until_ready(mvact(x, w1, w2))
    ref = mvact_ref(x, w1, w2)

    assert out.shape == (B, F, N_BLADES)
    err = jnp.max(jnp.abs(out - ref))
    # Newton-refined reciprocal -> tolerance tightened vs the previous 5e-3.
    assert jnp.allclose(out, ref, atol=1e-3, rtol=1e-3), (
        f"mismatch vs reference, max err {err}")

    # Also exercise the zero-transpose kernel-layout entry point.
    xt = jnp.transpose(x, (2, 1, 0))
    out_t = jax.block_until_ready(mvact_blades_major(xt, w1, w2))
    assert jnp.allclose(jnp.transpose(out_t, (2, 1, 0)), ref,
                        atol=1e-3, rtol=1e-3)

    print("KERNEL_OK")
</pallas_src>

<mosaic_0001>
module attributes {stable_mosaic.version = 11 : i64} {
  func.func @_mvact_kernel(%arg0: i32, %arg1: memref<8x16x128xf32, #tpu.memory_space<vmem>>, %arg2: memref<16x16xf32, #tpu.memory_space<vmem>>, %arg3: memref<16x16xf32, #tpu.memory_space<vmem>>, %arg4: memref<8x16x128xf32, #tpu.memory_space<vmem>>, %arg5: memref<8x16x128xf32, #tpu.memory_space<vmem>>) attributes {dimension_semantics = [#tpu.dimension_semantics<parallel>], iteration_bounds = array<i64: 1>, scalar_prefetch = 0 : i64, scratch_operands = 1 : i64, tpu.core_type = #tpu.core_type<tc>, window_params = [{transform_indices = @transform_0, window_bounds = array<i64: 8, 16, 128>}, {pipeline_mode = #tpu.pipeline_mode<synchronous>, transform_indices = @transform_1, window_bounds = array<i64: 16, 16>}, {pipeline_mode = #tpu.pipeline_mode<synchronous>, transform_indices = @transform_2, window_bounds = array<i64: 16, 16>}, {transform_indices = @transform_3, window_bounds = array<i64: 8, 16, 128>}]} {
    %c0 = arith.constant 0 : index
    %c0_0 = arith.constant 0 : index
    %0 = vector.load %arg2[%c0, %c0_0] : memref<16x16xf32, #tpu.memory_space<vmem>>, vector<16x16xf32>
    %c0_1 = arith.constant 0 : index
    %c0_2 = arith.constant 0 : index
    %1 = vector.load %arg3[%c0_1, %c0_2] : memref<16x16xf32, #tpu.memory_space<vmem>>, vector<16x16xf32>
    %c0_i32 = arith.constant 0 : i32
    %c1_i32 = arith.constant 1 : i32
    %2 = arith.muli %c0_i32, %c1_i32 : i32
    %c0_i32_3 = arith.constant 0 : i32
    %3 = arith.addi %c0_i32_3, %2 : i32
    %c128_i32 = arith.constant 128 : i32
    %4 = arith.muli %3, %c128_i32 : i32
    %5 = tpu.assume_multiple %4, 128 : i32
    %cst = arith.constant 0.000000e+00 : f32
    %6 = vector.broadcast %cst : f32 to vector<16x128xf32>
    %cst_4 = arith.constant 0.000000e+00 : f32
    %7 = vector.broadcast %cst_4 : f32 to vector<16x128xf32>
    %c0_5 = arith.constant 0 : index
    %c0_6 = arith.constant 0 : index
    %8 = arith.index_cast %5 : i32 to index
    %9 = vector.load %arg1[%c0_5, %c0_6, %8] : memref<8x16x128xf32, #tpu.memory_space<vmem>>, vector<1x16x128xf32>
    %10 = vector.shape_cast %9 : vector<1x16x128xf32> to vector<16x128xf32>
    %cst_7 = arith.constant dense<0.000000e+00> : vector<16x128xf32>
    %11 = tpu.matmul %0, %10, %cst_7 {dimension_numbers = #tpu.dot_dimension_numbers<[1], [0], [0], [1], [0, 0, 1, 1], [], []>} : vector<16x16xf32>, vector<16x128xf32>, vector<16x128xf32> -> vector<16x128xf32>
    %cst_8 = arith.constant dense<0.000000e+00> : vector<16x128xf32>
    %12 = tpu.matmul %1, %10, %cst_8 {dimension_numbers = #tpu.dot_dimension_numbers<[1], [0], [0], [1], [0, 0, 1, 1], [], []>} : vector<16x16xf32>, vector<16x128xf32>, vector<16x128xf32> -> vector<16x128xf32>
    %c0_9 = arith.constant 0 : index
    %c0_10 = arith.constant 0 : index
    %13 = arith.index_cast %5 : i32 to index
    %14 = vector.load %arg4[%c0_9, %c0_10, %13] : memref<8x16x128xf32, #tpu.memory_space<vmem>>, vector<1x16x128xf32>
    %15 = vector.shape_cast %14 : vector<1x16x128xf32> to vector<16x128xf32>
    %16 = vector.shape_cast %11 : vector<16x128xf32> to vector<1x16x128xf32>
    tpu.vector_store %arg4[%c0_9, %c0_10, %13], %16 {strides = array<i32>} : memref<8x16x128xf32, #tpu.memory_space<vmem>>, vector<1x16x128xf32>,
    %c0_11 = arith.constant 0 : index
    %c0_12 = arith.constant 0 : index
    %c0_13 = arith.constant 0 : index
    %17 = vector.load %arg5[%c0_11, %c0_12, %c0_13] : memref<8x16x128xf32, #tpu.memory_space<vmem>>, vector<1x16x128xf32>
    %18 = vector.shape_cast %17 : vector<1x16x128xf32> to vector<16x128xf32>
    %19 = vector.shape_cast %12 : vector<16x128xf32> to vector<1x16x128xf32>
    tpu.vector_store %arg5[%c0_11, %c0_12, %c0_13], %19 {strides = array<i32>} : memref<8x16x128xf32, #tpu.memory_space<vmem>>, vector<1x16x128xf32>,
    %20 = arith.mulf %11, %12 : vector<16x128xf32>
    %21 = arith.addf %6, %20 : vector<16x128xf32>
    %22 = arith.mulf %12, %12 : vector<16x128xf32>
    %23 = arith.addf %7, %22 : vector<16x128xf32>
    %c1 = arith.constant 1 : index
    %c0_14 = arith.constant 0 : index
    %24 = arith.index_cast %5 : i32 to index
    %25 = vector.load %arg1[%c1, %c0_14, %24] : memref<8x16x128xf32, #tpu.memory_space<vmem>>, vector<1x16x128xf32>
    %26 = vector.shape_cast %25 : vector<1x16x128xf32> to vector<16x128xf32>
    %cst_15 = arith.constant dense<0.000000e+00> : vector<16x128xf32>
    %27 = tpu.matmul %0, %26, %cst_15 {dimension_numbers = #tpu.dot_dimension_numbers<[1], [0], [0], [1], [0, 0, 1, 1], [], []>} : vector<16x16xf32>, vector<16x128xf32>, vector<16x128xf32> -> vector<16x128xf32>
    %cst_16 = arith.constant dense<0.000000e+00> : vector<16x128xf32>
    %28 = tpu.matmul %1, %26, %cst_16 {dimension_numbers = #tpu.dot_dimension_numbers<[1], [0], [0], [1], [0, 0, 1, 1], [], []>} : vector<16x16xf32>, vector<16x128xf32>, vector<16x128xf32> -> vector<16x128xf32>
    %c1_17 = arith.constant 1 : index
    %c0_18 = arith.constant 0 : index
    %29 = arith.index_cast %5 : i32 to index
    %30 = vector.load %arg4[%c1_17, %c0_18, %29] : memref<8x16x128xf32, #tpu.memory_space<vmem>>, vector<1x16x128xf32>
    %31 = vector.shape_cast %30 : vector<1x16x128xf32> to vector<16x128xf32>
    %32 = vector.shape_cast %27 : vector<16x128xf32> to vector<1x16x128xf32>
    tpu.vector_store %arg4[%c1_17, %c0_18, %29], %32 {strides = array<i32>} : memref<8x16x128xf32, #tpu.memory_space<vmem>>, vector<1x16x128xf32>,
    %c1_19 = arith.constant 1 : index
    %c0_20 = arith.constant 0 : index
    %c0_21 = arith.constant 0 : index
    %33 = vector.load %arg5[%c1_19, %c0_20, %c0_21] : memref<8x16x128xf32, #tpu.memory_space<vmem>>, vector<1x16x128xf32>
    %34 = vector.shape_cast %33 : vector<1x16x128xf32> to vector<16x128xf32>
    %35 = vector.shape_cast %28 : vector<16x128xf32> to vector<1x16x128xf32>
    tpu.vector_store %arg5[%c1_19, %c0_20, %c0_21], %35 {strides = array<i32>} : memref<8x16x128xf32, #tpu.memory_space<vmem>>, vector<1x16x128xf32>,
    %36 = arith.mulf %27, %28 : vector<16x128xf32>
    %37 = arith.addf %21, %36 : vector<16x128xf32>
    %38 = arith.mulf %28, %28 : vector<16x128xf32>
    %39 = arith.addf %23, %38 : vector<16x128xf32>
    %c2 = arith.constant 2 : index
    %c0_22 = arith.constant 0 : index
    %40 = arith.index_cast %5 : i32 to index
    %41 = vector.load %arg1[%c2, %c0_22, %40] : memref<8x16x128xf32, #tpu.memory_space<vmem>>, vector<1x16x128xf32>
    %42 = vector.shape_cast %41 : vector<1x16x128xf32> to vector<16x128xf32>
    %cst_23 = arith.constant dense<0.000000e+00> : vector<16x128xf32>
    %43 = tpu.matmul %0, %42, %cst_23 {dimension_numbers = #tpu.dot_dimension_numbers<[1], [0], [0], [1], [0, 0, 1, 1], [], []>} : vector<16x16xf32>, vector<16x128xf32>, vector<16x128xf32> -> vector<16x128xf32>
    %cst_24 = arith.constant dense<0.000000e+00> : vector<16x128xf32>
    %44 = tpu.matmul %1, %42, %cst_24 {dimension_numbers = #tpu.dot_dimension_numbers<[1], [0], [0], [1], [0, 0, 1, 1], [], []>} : vector<16x16xf32>, vector<16x128xf32>, vector<16x128xf32> -> vector<16x128xf32>
    %c2_25 = arith.constant 2 : index
    %c0_26 = arith.constant 0 : index
    %45 = arith.index_cast %5 : i32 to index
    %46 = vector.load %arg4[%c2_25, %c0_26, %45] : memref<8x16x128xf32, #tpu.memory_space<vmem>>, vector<1x16x128xf32>
    %47 = vector.shape_cast %46 : vector<1x16x128xf32> to vector<16x128xf32>
    %48 = vector.shape_cast %43 : vector<16x128xf32> to vector<1x16x128xf32>
    tpu.vector_store %arg4[%c2_25, %c0_26, %45], %48 {strides = array<i32>} : memref<8x16x128xf32, #tpu.memory_space<vmem>>, vector<1x16x128xf32>,
    %c2_27 = arith.constant 2 : index
    %c0_28 = arith.constant 0 : index
    %c0_29 = arith.constant 0 : index
    %49 = vector.load %arg5[%c2_27, %c0_28, %c0_29] : memref<8x16x128xf32, #tpu.memory_space<vmem>>, vector<1x16x128xf32>
    %50 = vector.shape_cast %49 : vector<1x16x128xf32> to vector<16x128xf32>
    %51 = vector.shape_cast %44 : vector<16x128xf32> to vector<1x16x128xf32>
    tpu.vector_store %arg5[%c2_27, %c0_28, %c0_29], %51 {strides = array<i32>} : memref<8x16x128xf32, #tpu.memory_space<vmem>>, vector<1x16x128xf32>,
    %52 = arith.mulf %43, %44 : vector<16x128xf32>
    %53 = arith.addf %37, %52 : vector<16x128xf32>
    %54 = arith.mulf %44, %44 : vector<16x128xf32>
    %55 = arith.addf %39, %54 : vector<16x128xf32>
    %c3 = arith.constant 3 : index
    %c0_30 = arith.constant 0 : index
    %56 = arith.index_cast %5 : i32 to index
    %57 = vector.load %arg1[%c3, %c0_30, %56] : memref<8x16x128xf32, #tpu.memory_space<vmem>>, vector<1x16x128xf32>
    %58 = vector.shape_cast %57 : vector<1x16x128xf32> to vector<16x128xf32>
    %cst_31 = arith.constant dense<0.000000e+00> : vector<16x128xf32>
    %59 = tpu.matmul %0, %58, %cst_31 {dimension_numbers = #tpu.dot_dimension_numbers<[1], [0], [0], [1], [0, 0, 1, 1], [], []>} : vector<16x16xf32>, vector<16x128xf32>, vector<16x128xf32> -> vector<16x128xf32>
    %cst_32 = arith.constant dense<0.000000e+00> : vector<16x128xf32>
    %60 = tpu.matmul %1, %58, %cst_32 {dimension_numbers = #tpu.dot_dimension_numbers<[1], [0], [0], [1], [0, 0, 1, 1], [], []>} : vector<16x16xf32>, vector<16x128xf32>, vector<16x128xf32> -> vector<16x128xf32>
    %c3_33 = arith.constant 3 : index
    %c0_34 = arith.constant 0 : index
    %61 = arith.index_cast %5 : i32 to index
    %62 = vector.load %arg4[%c3_33, %c0_34, %61] : memref<8x16x128xf32, #tpu.memory_space<vmem>>, vector<1x16x128xf32>
    %63 = vector.shape_cast %62 : vector<1x16x128xf32> to vector<16x128xf32>
    %64 = vector.shape_cast %59 : vector<16x128xf32> to vector<1x16x128xf32>
    tpu.vector_store %arg4[%c3_33, %c0_34, %61], %64 {strides = array<i32>} : memref<8x16x128xf32, #tpu.memory_space<vmem>>, vector<1x16x128xf32>,
    %c3_35 = arith.constant 3 : index
    %c0_36 = arith.constant 0 : index
    %c0_37 = arith.constant 0 : index
    %65 = vector.load %arg5[%c3_35, %c0_36, %c0_37] : memref<8x16x128xf32, #tpu.memory_space<vmem>>, vector<1x16x128xf32>
    %66 = vector.shape_cast %65 : vector<1x16x128xf32> to vector<16x128xf32>
    %67 = vector.shape_cast %60 : vector<16x128xf32> to vector<1x16x128xf32>
    tpu.vector_store %arg5[%c3_35, %c0_36, %c0_37], %67 {strides = array<i32>} : memref<8x16x128xf32, #tpu.memory_space<vmem>>, vector<1x16x128xf32>,
    %68 = arith.mulf %59, %60 : vector<16x128xf32>
    %69 = arith.addf %53, %68 : vector<16x128xf32>
    %70 = arith.mulf %60, %60 : vector<16x128xf32>
    %71 = arith.addf %55, %70 : vector<16x128xf32>
    %c4 = arith.constant 4 : index
    %c0_38 = arith.constant 0 : index
    %72 = arith.index_cast %5 : i32 to index
    %73 = vector.load %arg1[%c4, %c0_38, %72] : memref<8x16x128xf32, #tpu.memory_space<vmem>>, vector<1x16x128xf32>
    %74 = vector.shape_cast %73 : vector<1x16x128xf32> to vector<16x128xf32>
    %cst_39 = arith.constant dense<0.000000e+00> : vector<16x128xf32>
    %75 = tpu.matmul %0, %74, %cst_39 {dimension_numbers = #tpu.dot_dimension_numbers<[1], [0], [0], [1], [0, 0, 1, 1], [], []>} : vector<16x16xf32>, vector<16x128xf32>, vector<16x128xf32> -> vector<16x128xf32>
    %cst_40 = arith.constant dense<0.000000e+00> : vector<16x128xf32>
    %76 = tpu.matmul %1, %74, %cst_40 {dimension_numbers = #tpu.dot_dimension_numbers<[1], [0], [0], [1], [0, 0, 1, 1], [], []>} : vector<16x16xf32>, vector<16x128xf32>, vector<16x128xf32> -> vector<16x128xf32>
    %c4_41 = arith.constant 4 : index
    %c0_42 = arith.constant 0 : index
    %77 = arith.index_cast %5 : i32 to index
    %78 = vector.load %arg4[%c4_41, %c0_42, %77] : memref<8x16x128xf32, #tpu.memory_space<vmem>>, vector<1x16x128xf32>
    %79 = vector.shape_cast %78 : vector<1x16x128xf32> to vector<16x128xf32>
    %80 = vector.shape_cast %75 : vector<16x128xf32> to vector<1x16x128xf32>
    tpu.vector_store %arg4[%c4_41, %c0_42, %77], %80 {strides = array<i32>} : memref<8x16x128xf32, #tpu.memory_space<vmem>>, vector<1x16x128xf32>,
    %c4_43 = arith.constant 4 : index
    %c0_44 = arith.constant 0 : index
    %c0_45 = arith.constant 0 : index
    %81 = vector.load %arg5[%c4_43, %c0_44, %c0_45] : memref<8x16x128xf32, #tpu.memory_space<vmem>>, vector<1x16x128xf32>
    %82 = vector.shape_cast %81 : vector<1x16x128xf32> to vector<16x128xf32>
    %83 = vector.shape_cast %76 : vector<16x128xf32> to vector<1x16x128xf32>
    tpu.vector_store %arg5[%c4_43, %c0_44, %c0_45], %83 {strides = array<i32>} : memref<8x16x128xf32, #tpu.memory_space<vmem>>, vector<1x16x128xf32>,
    %84 = arith.mulf %75, %76 : vector<16x128xf32>
    %85 = arith.addf %69, %84 : vector<16x128xf32>
    %86 = arith.mulf %76, %76 : vector<16x128xf32>
    %87 = arith.addf %71, %86 : vector<16x128xf32>
    %c5 = arith.constant 5 : index
    %c0_46 = arith.constant 0 : index
    %88 = arith.index_cast %5 : i32 to index
    %89 = vector.load %arg1[%c5, %c0_46, %88] : memref<8x16x128xf32, #tpu.memory_space<vmem>>, vector<1x16x128xf32>
    %90 = vector.shape_cast %89 : vector<1x16x128xf32> to vector<16x128xf32>
    %cst_47 = arith.constant dense<0.000000e+00> : vector<16x128xf32>
    %91 = tpu.matmul %0, %90, %cst_47 {dimension_numbers = #tpu.dot_dimension_numbers<[1], [0], [0], [1], [0, 0, 1, 1], [], []>} : vector<16x16xf32>, vector<16x128xf32>, vector<16x128xf32> -> vector<16x128xf32>
    %cst_48 = arith.constant dense<0.000000e+00> : vector<16x128xf32>
    %92 = tpu.matmul %1, %90, %cst_48 {dimension_numbers = #tpu.dot_dimension_numbers<[1], [0], [0], [1], [0, 0, 1, 1], [], []>} : vector<16x16xf32>, vector<16x128xf32>, vector<16x128xf32> -> vector<16x128xf32>
    %c5_49 = arith.constant 5 : index
    %c0_50 = arith.constant 0 : index
    %93 = arith.index_cast %5 : i32 to index
    %94 = vector.load %arg4[%c5_49, %c0_50, %93] : memref<8x16x128xf32, #tpu.memory_space<vmem>>, vector<1x16x128xf32>
    %95 = vector.shape_cast %94 : vector<1x16x128xf32> to vector<16x128xf32>
    %96 = vector.shape_cast %91 : vector<16x128xf32> to vector<1x16x128xf32>
    tpu.vector_store %arg4[%c5_49, %c0_50, %93], %96 {strides = array<i32>} : memref<8x16x128xf32, #tpu.memory_space<vmem>>, vector<1x16x128xf32>,
    %c5_51 = arith.constant 5 : index
    %c0_52 = arith.constant 0 : index
    %c0_53 = arith.constant 0 : index
    %97 = vector.load %arg5[%c5_51, %c0_52, %c0_53] : memref<8x16x128xf32, #tpu.memory_space<vmem>>, vector<1x16x128xf32>
    %98 = vector.shape_cast %97 : vector<1x16x128xf32> to vector<16x128xf32>
    %99 = vector.shape_cast %92 : vector<16x128xf32> to vector<1x16x128xf32>
    tpu.vector_store %arg5[%c5_51, %c0_52, %c0_53], %99 {strides = array<i32>} : memref<8x16x128xf32, #tpu.memory_space<vmem>>, vector<1x16x128xf32>,
    %100 = arith.mulf %91, %92 : vector<16x128xf32>
    %101 = arith.addf %85, %100 : vector<16x128xf32>
    %102 = arith.mulf %92, %92 : vector<16x128xf32>
    %103 = arith.addf %87, %102 : vector<16x128xf32>
    %c6 = arith.constant 6 : index
    %c0_54 = arith.constant 0 : index
    %104 = arith.index_cast %5 : i32 to index
    %105 = vector.load %arg1[%c6, %c0_54, %104] : memref<8x16x128xf32, #tpu.memory_space<vmem>>, vector<1x16x128xf32>
    %106 = vector.shape_cast %105 : vector<1x16x128xf32> to vector<16x128xf32>
    %cst_55 = arith.constant dense<0.000000e+00> : vector<16x128xf32>
    %107 = tpu.matmul %0, %106, %cst_55 {dimension_numbers = #tpu.dot_dimension_numbers<[1], [0], [0], [1], [0, 0, 1, 1], [], []>} : vector<16x16xf32>, vector<16x128xf32>, vector<16x128xf32> -> vector<16x128xf32>
    %cst_56 = arith.constant dense<0.000000e+00> : vector<16x128xf32>
    %108 = tpu.matmul %1, %106, %cst_56 {dimension_numbers = #tpu.dot_dimension_numbers<[1], [0], [0], [1], [0, 0, 1, 1], [], []>} : vector<16x16xf32>, vector<16x128xf32>, vector<16x128xf32> -> vector<16x128xf32>
    %c6_57 = arith.constant 6 : index
    %c0_58 = arith.constant 0 : index
    %109 = arith.index_cast %5 : i32 to index
    %110 = vector.load %arg4[%c6_57, %c0_58, %109] : memref<8x16x128xf32, #tpu.memory_space<vmem>>, vector<1x16x128xf32>
    %111 = vector.shape_cast %110 : vector<1x16x128xf32> to vector<16x128xf32>
    %112 = vector.shape_cast %107 : vector<16x128xf32> to vector<1x16x128xf32>
    tpu.vector_store %arg4[%c6_57, %c0_58, %109], %112 {strides = array<i32>} : memref<8x16x128xf32, #tpu.memory_space<vmem>>, vector<1x16x128xf32>,
    %c6_59 = arith.constant 6 : index
    %c0_60 = arith.constant 0 : index
    %c0_61 = arith.constant 0 : index
    %113 = vector.load %arg5[%c6_59, %c0_60, %c0_61] : memref<8x16x128xf32, #tpu.memory_space<vmem>>, vector<1x16x128xf32>
    %114 = vector.shape_cast %113 : vector<1x16x128xf32> to vector<16x128xf32>
    %115 = vector.shape_cast %108 : vector<16x128xf32> to vector<1x16x128xf32>
    tpu.vector_store %arg5[%c6_59, %c0_60, %c0_61], %115 {strides = array<i32>} : memref<8x16x128xf32, #tpu.memory_space<vmem>>, vector<1x16x128xf32>,
    %116 = arith.mulf %107, %108 : vector<16x128xf32>
    %117 = arith.addf %101, %116 : vector<16x128xf32>
    %118 = arith.mulf %108, %108 : vector<16x128xf32>
    %119 = arith.addf %103, %118 : vector<16x128xf32>
    %c7 = arith.constant 7 : index
    %c0_62 = arith.constant 0 : index
    %120 = arith.index_cast %5 : i32 to index
    %121 = vector.load %arg1[%c7, %c0_62, %120] : memref<8x16x128xf32, #tpu.memory_space<vmem>>, vector<1x16x128xf32>
    %122 = vector.shape_cast %121 : vector<1x16x128xf32> to vector<16x128xf32>
    %cst_63 = arith.constant dense<0.000000e+00> : vector<16x128xf32>
    %123 = tpu.matmul %0, %122, %cst_63 {dimension_numbers = #tpu.dot_dimension_numbers<[1], [0], [0], [1], [0, 0, 1, 1], [], []>} : vector<16x16xf32>, vector<16x128xf32>, vector<16x128xf32> -> vector<16x128xf32>
    %cst_64 = arith.constant dense<0.000000e+00> : vector<16x128xf32>
    %124 = tpu.matmul %1, %122, %cst_64 {dimension_numbers = #tpu.dot_dimension_numbers<[1], [0], [0], [1], [0, 0, 1, 1], [], []>} : vector<16x16xf32>, vector<16x128xf32>, vector<16x128xf32> -> vector<16x128xf32>
    %c7_65 = arith.constant 7 : index
    %c0_66 = arith.constant 0 : index
    %125 = arith.index_cast %5 : i32 to index
    %126 = vector.load %arg4[%c7_65, %c0_66, %125] : memref<8x16x128xf32, #tpu.memory_space<vmem>>, vector<1x16x128xf32>
    %127 = vector.shape_cast %126 : vector<1x16x128xf32> to vector<16x128xf32>
    %128 = vector.shape_cast %123 : vector<16x128xf32> to vector<1x16x128xf32>
    tpu.vector_store %arg4[%c7_65, %c0_66, %125], %128 {strides = array<i32>} : memref<8x16x128xf32, #tpu.memory_space<vmem>>, vector<1x16x128xf32>,
    %c7_67 = arith.constant 7 : index
    %c0_68 = arith.constant 0 : index
    %c0_69 = arith.constant 0 : index
    %129 = vector.load %arg5[%c7_67, %c0_68, %c0_69] : memref<8x16x128xf32, #tpu.memory_space<vmem>>, vector<1x16x128xf32>
    %130 = vector.shape_cast %129 : vector<1x16x128xf32> to vector<16x128xf32>
    %131 = vector.shape_cast %124 : vector<16x128xf32> to vector<1x16x128xf32>
    tpu.vector_store %arg5[%c7_67, %c0_68, %c0_69], %131 {strides = array<i32>} : memref<8x16x128xf32, #tpu.memory_space<vmem>>, vector<1x16x128xf32>,
    %132 = arith.mulf %123, %124 : vector<16x128xf32>
    %133 = arith.addf %117, %132 : vector<16x128xf32>
    %134 = arith.mulf %124, %124 : vector<16x128xf32>
    %135 = arith.addf %119, %134 : vector<16x128xf32>
    %136 = tpu.reciprocal %135 {approx = true} : vector<16x128xf32> -> vector<16x128xf32>
    %137 = arith.mulf %135, %136 : vector<16x128xf32>
    %cst_70 = arith.constant 2.000000e+00 : f32
    %138 = vector.broadcast %cst_70 : f32 to vector<16x128xf32>
    %139 = arith.subf %138, %137 : vector<16x128xf32>
    %140 = arith.mulf %136, %139 : vector<16x128xf32>
    %cst_71 = arith.constant 0.000000e+00 : f32
    %141 = vector.broadcast %cst_71 : f32 to vector<16x128xf32>
    %142 = arith.cmpf ogt, %133, %141 : vector<16x128xf32>
    %143 = arith.mulf %133, %140 : vector<16x128xf32>
    %cst_72 = arith.constant 0.000000e+00 : f32
    %144 = vector.broadcast %cst_72 : f32 to vector<16x128xf32>
    %145 = arith.select %142, %144, %143 : vector<16x128xi1>, vector<16x128xf32>
    %c0_73 = arith.constant 0 : index
    %c0_74 = arith.constant 0 : index
    %146 = arith.index_cast %5 : i32 to index
    %147 = vector.load %arg4[%c0_73, %c0_74, %146] : memref<8x16x128xf32, #tpu.memory_space<vmem>>, vector<1x16x128xf32>
    %148 = vector.shape_cast %147 : vector<1x16x128xf32> to vector<16x128xf32>
    %c0_75 = arith.constant 0 : index
    %c0_76 = arith.constant 0 : index
    %c0_77 = arith.constant 0 : index
    %149 = vector.load %arg5[%c0_75, %c0_76, %c0_77] : memref<8x16x128xf32, #tpu.memory_space<vmem>>, vector<1x16x128xf32>
    %150 = vector.shape_cast %149 : vector<1x16x128xf32> to vector<16x128xf32>
    %151 = arith.mulf %145, %150 : vector<16x128xf32>
    %152 = arith.subf %148, %151 : vector<16x128xf32>
    %c0_78 = arith.constant 0 : index
    %c0_79 = arith.constant 0 : index
    %153 = arith.index_cast %5 : i32 to index
    %154 = vector.load %arg4[%c0_78, %c0_79, %153] : memref<8x16x128xf32, #tpu.memory_space<vmem>>, vector<1x16x128xf32>
    %155 = vector.shape_cast %154 : vector<1x16x128xf32> to vector<16x128xf32>
    %156 = vector.shape_cast %152 : vector<16x128xf32> to vector<1x16x128xf32>
    tpu.vector_store %arg4[%c0_78, %c0_79, %153], %156 {strides = array<i32>} : memref<8x16x128xf32, #tpu.memory_space<vmem>>, vector<1x16x128xf32>,
    %c1_80 = arith.constant 1 : index
    %c0_81 = arith.constant 0 : index
    %157 = arith.index_cast %5 : i32 to index
    %158 = vector.load %arg4[%c1_80, %c0_81, %157] : memref<8x16x128xf32, #tpu.memory_space<vmem>>, vector<1x16x128xf32>
    %159 = vector.shape_cast %158 : vector<1x16x128xf32> to vector<16x128xf32>
    %c1_82 = arith.constant 1 : index
    %c0_83 = arith.constant 0 : index
    %c0_84 = arith.constant 0 : index
    %160 = vector.load %arg5[%c1_82, %c0_83, %c0_84] : memref<8x16x128xf32, #tpu.memory_space<vmem>>, vector<1x16x128xf32>
    %161 = vector.shape_cast %160 : vector<1x16x128xf32> to vector<16x128xf32>
    %162 = arith.mulf %145, %161 : vector<16x128xf32>
    %163 = arith.subf %159, %162 : vector<16x128xf32>
    %c1_85 = arith.constant 1 : index
    %c0_86 = arith.constant 0 : index
    %164 = arith.index_cast %5 : i32 to index
    %165 = vector.load %arg4[%c1_85, %c0_86, %164] : memref<8x16x128xf32, #tpu.memory_space<vmem>>, vector<1x16x128xf32>
    %166 = vector.shape_cast %165 : vector<1x16x128xf32> to vector<16x128xf32>
    %167 = vector.shape_cast %163 : vector<16x128xf32> to vector<1x16x128xf32>
    tpu.vector_store %arg4[%c1_85, %c0_86, %164], %167 {strides = array<i32>} : memref<8x16x128xf32, #tpu.memory_space<vmem>>, vector<1x16x128xf32>,
    %c2_87 = arith.constant 2 : index
    %c0_88 = arith.constant 0 : index
    %168 = arith.index_cast %5 : i32 to index
    %169 = vector.load %arg4[%c2_87, %c0_88, %168] : memref<8x16x128xf32, #tpu.memory_space<vmem>>, vector<1x16x128xf32>
    %170 = vector.shape_cast %169 : vector<1x16x128xf32> to vector<16x128xf32>
    %c2_89 = arith.constant 2 : index
    %c0_90 = arith.constant 0 : index
    %c0_91 = arith.constant 0 : index
    %171 = vector.load %arg5[%c2_89, %c0_90, %c0_91] : memref<8x16x128xf32, #tpu.memory_space<vmem>>, vector<1x16x128xf32>
    %172 = vector.shape_cast %171 : vector<1x16x128xf32> to vector<16x128xf32>
    %173 = arith.mulf %145, %172 : vector<16x128xf32>
    %174 = arith.subf %170, %173 : vector<16x128xf32>
    %c2_92 = arith.constant 2 : index
    %c0_93 = arith.constant 0 : index
    %175 = arith.index_cast %5 : i32 to index
    %176 = vector.load %arg4[%c2_92, %c0_93, %175] : memref<8x16x128xf32, #tpu.memory_space<vmem>>, vector<1x16x128xf32>
    %177 = vector.shape_cast %176 : vector<1x16x128xf32> to vector<16x128xf32>
    %178 = vector.shape_cast %174 : vector<16x128xf32> to vector<1x16x128xf32>
    tpu.vector_store %arg4[%c2_92, %c0_93, %175], %178 {strides = array<i32>} : memref<8x16x128xf32, #tpu.memory_space<vmem>>, vector<1x16x128xf32>,
    %c3_94 = arith.constant 3 : index
    %c0_95 = arith.constant 0 : index
    %179 = arith.index_cast %5 : i32 to index
    %180 = vector.load %arg4[%c3_94, %c0_95, %179] : memref<8x16x128xf32, #tpu.memory_space<vmem>>, vector<1x16x128xf32>
    %181 = vector.shape_cast %180 : vector<1x16x128xf32> to vector<16x128xf32>
    %c3_96 = arith.constant 3 : index
    %c0_97 = arith.constant 0 : index
    %c0_98 = arith.constant 0 : index
    %182 = vector.load %arg5[%c3_96, %c0_97, %c0_98] : memref<8x16x128xf32, #tpu.memory_space<vmem>>, vector<1x16x128xf32>
    %183 = vector.shape_cast %182 : vector<1x16x128xf32> to vector<16x128xf32>
    %184 = arith.mulf %145, %183 : vector<16x128xf32>
    %185 = arith.subf %181, %184 : vector<16x128xf32>
    %c3_99 = arith.constant 3 : index
    %c0_100 = arith.constant 0 : index
    %186 = arith.index_cast %5 : i32 to index
    %187 = vector.load %arg4[%c3_99, %c0_100, %186] : memref<8x16x128xf32, #tpu.memory_space<vmem>>, vector<1x16x128xf32>
    %188 = vector.shape_cast %187 : vector<1x16x128xf32> to vector<16x128xf32>
    %189 = vector.shape_cast %185 : vector<16x128xf32> to vector<1x16x128xf32>
    tpu.vector_store %arg4[%c3_99, %c0_100, %186], %189 {strides = array<i32>} : memref<8x16x128xf32, #tpu.memory_space<vmem>>, vector<1x16x128xf32>,
    %c4_101 = arith.constant 4 : index
    %c0_102 = arith.constant 0 : index
    %190 = arith.index_cast %5 : i32 to index
    %191 = vector.load %arg4[%c4_101, %c0_102, %190] : memref<8x16x128xf32, #tpu.memory_space<vmem>>, vector<1x16x128xf32>
    %192 = vector.shape_cast %191 : vector<1x16x128xf32> to vector<16x128xf32>
    %c4_103 = arith.constant 4 : index
    %c0_104 = arith.constant 0 : index
    %c0_105 = arith.constant 0 : index
    %193 = vector.load %arg5[%c4_103, %c0_104, %c0_105] : memref<8x16x128xf32, #tpu.memory_space<vmem>>, vector<1x16x128xf32>
    %194 = vector.shape_cast %193 : vector<1x16x128xf32> to vector<16x128xf32>
    %195 = arith.mulf %145, %194 : vector<16x128xf32>
    %196 = arith.subf %192, %195 : vector<16x128xf32>
    %c4_106 = arith.constant 4 : index
    %c0_107 = arith.constant 0 : index
    %197 = arith.index_cast %5 : i32 to index
    %198 = vector.load %arg4[%c4_106, %c0_107, %197] : memref<8x16x128xf32, #tpu.memory_space<vmem>>, vector<1x16x128xf32>
    %199 = vector.shape_cast %198 : vector<1x16x128xf32> to vector<16x128xf32>
    %200 = vector.shape_cast %196 : vector<16x128xf32> to vector<1x16x128xf32>
    tpu.vector_store %arg4[%c4_106, %c0_107, %197], %200 {strides = array<i32>} : memref<8x16x128xf32, #tpu.memory_space<vmem>>, vector<1x16x128xf32>,
    %c5_108 = arith.constant 5 : index
    %c0_109 = arith.constant 0 : index
    %201 = arith.index_cast %5 : i32 to index
    %202 = vector.load %arg4[%c5_108, %c0_109, %201] : memref<8x16x128xf32, #tpu.memory_space<vmem>>, vector<1x16x128xf32>
    %203 = vector.shape_cast %202 : vector<1x16x128xf32> to vector<16x128xf32>
    %c5_110 = arith.constant 5 : index
    %c0_111 = arith.constant 0 : index
    %c0_112 = arith.constant 0 : index
    %204 = vector.load %arg5[%c5_110, %c0_111, %c0_112] : memref<8x16x128xf32, #tpu.memory_space<vmem>>, vector<1x16x128xf32>
    %205 = vector.shape_cast %204 : vector<1x16x128xf32> to vector<16x128xf32>
    %206 = arith.mulf %145, %205 : vector<16x128xf32>
    %207 = arith.subf %203, %206 : vector<16x128xf32>
    %c5_113 = arith.constant 5 : index
    %c0_114 = arith.constant 0 : index
    %208 = arith.index_cast %5 : i32 to index
    %209 = vector.load %arg4[%c5_113, %c0_114, %208] : memref<8x16x128xf32, #tpu.memory_space<vmem>>, vector<1x16x128xf32>
    %210 = vector.shape_cast %209 : vector<1x16x128xf32> to vector<16x128xf32>
    %211 = vector.shape_cast %207 : vector<16x128xf32> to vector<1x16x128xf32>
    tpu.vector_store %arg4[%c5_113, %c0_114, %208], %211 {strides = array<i32>} : memref<8x16x128xf32, #tpu.memory_space<vmem>>, vector<1x16x128xf32>,
    %c6_115 = arith.constant 6 : index
    %c0_116 = arith.constant 0 : index
    %212 = arith.index_cast %5 : i32 to index
    %213 = vector.load %arg4[%c6_115, %c0_116, %212] : memref<8x16x128xf32, #tpu.memory_space<vmem>>, vector<1x16x128xf32>
    %214 = vector.shape_cast %213 : vector<1x16x128xf32> to vector<16x128xf32>
    %c6_117 = arith.constant 6 : index
    %c0_118 = arith.constant 0 : index
    %c0_119 = arith.constant 0 : index
    %215 = vector.load %arg5[%c6_117, %c0_118, %c0_119] : memref<8x16x128xf32, #tpu.memory_space<vmem>>, vector<1x16x128xf32>
    %216 = vector.shape_cast %215 : vector<1x16x128xf32> to vector<16x128xf32>
    %217 = arith.mulf %145, %216 : vector<16x128xf32>
    %218 = arith.subf %214, %217 : vector<16x128xf32>
    %c6_120 = arith.constant 6 : index
    %c0_121 = arith.constant 0 : index
    %219 = arith.index_cast %5 : i32 to index
    %220 = vector.load %arg4[%c6_120, %c0_121, %219] : memref<8x16x128xf32, #tpu.memory_space<vmem>>, vector<1x16x128xf32>
    %221 = vector.shape_cast %220 : vector<1x16x128xf32> to vector<16x128xf32>
    %222 = vector.shape_cast %218 : vector<16x128xf32> to vector<1x16x128xf32>
    tpu.vector_store %arg4[%c6_120, %c0_121, %219], %222 {strides = array<i32>} : memref<8x16x128xf32, #tpu.memory_space<vmem>>, vector<1x16x128xf32>,
    %c7_122 = arith.constant 7 : index
    %c0_123 = arith.constant 0 : index
    %223 = arith.index_cast %5 : i32 to index
    %224 = vector.load %arg4[%c7_122, %c0_123, %223] : memref<8x16x128xf32, #tpu.memory_space<vmem>>, vector<1x16x128xf32>
    %225 = vector.shape_cast %224 : vector<1x16x128xf32> to vector<16x128xf32>
    %c7_124 = arith.constant 7 : index
    %c0_125 = arith.constant 0 : index
    %c0_126 = arith.constant 0 : index
    %226 = vector.load %arg5[%c7_124, %c0_125, %c0_126] : memref<8x16x128xf32, #tpu.memory_space<vmem>>, vector<1x16x128xf32>
    %227 = vector.shape_cast %226 : vector<1x16x128xf32> to vector<16x128xf32>
    %228 = arith.mulf %145, %227 : vector<16x128xf32>
    %229 = arith.subf %225, %228 : vector<16x128xf32>
    %c7_127 = arith.constant 7 : index
    %c0_128 = arith.constant 0 : index
    %230 = arith.index_cast %5 : i32 to index
    %231 = vector.load %arg4[%c7_127, %c0_128, %230] : memref<8x16x128xf32, #tpu.memory_space<vmem>>, vector<1x16x128xf32>
    %232 = vector.shape_cast %231 : vector<1x16x128xf32> to vector<16x128xf32>
    %233 = vector.shape_cast %229 : vector<16x128xf32> to vector<1x16x128xf32>
    tpu.vector_store %arg4[%c7_127, %c0_128, %230], %233 {strides = array<i32>} : memref<8x16x128xf32, #tpu.memory_space<vmem>>, vector<1x16x128xf32>,
    %c1_i32_129 = arith.constant 1 : i32
    return
  }
  func.func @transform_0(%arg0: i32) -> (i32, i32, i32) {
    %c0_i32 = arith.constant 0 : i32
    %c0_i32_0 = arith.constant 0 : i32
    %c0_i32_1 = arith.constant 0 : i32
    return %c0_i32, %c0_i32_0, %arg0 : i32, i32, i32
  }
  func.func @transform_1(%arg0: i32) -> (i32, i32) {
    %c0_i32 = arith.constant 0 : i32
    %c0_i32_0 = arith.constant 0 : i32
    %c0_i32_1 = arith.constant 0 : i32
    return %c0_i32, %c0_i32_0 : i32, i32
  }
  func.func @transform_2(%arg0: i32) -> (i32, i32) {
    %c0_i32 = arith.constant 0 : i32
    %c0_i32_0 = arith.constant 0 : i32
    %c0_i32_1 = arith.constant 0 : i32
    return %c0_i32, %c0_i32_0 : i32, i32
  }
  func.func @transform_3(%arg0: i32) -> (i32, i32, i32) {
    %c0_i32 = arith.constant 0 : i32
    %c0_i32_0 = arith.constant 0 : i32
    %c0_i32_1 = arith.constant 0 : i32
    return %c0_i32, %c0_i32_0, %arg0 : i32, i32, i32
  }
}

</mosaic_0001>

<llo_original>
// kernel: mvact_blades_major.1
$region0: #{mvact_blades_major.1}
  #allocation0 [shape = 'u32[]', space=smem, size = 0x4, offset = 0x4, fixed_abs, tag = 'smem constant byte address 0x4 - core index']
  #allocation1 [shape = 'u32[144,128]{1,0:T(1,128)}', space=vmem, size = 0x12000, scoped, tag = 'internal scratch']
  #allocation2 [shape = 'f32[8,16,128]{2,1,0:T(8,128)}', space=vmem, size = 0x10000, scoped, tag = 'scratch operand']
  %s0 = inlined_call_operand.vmem [shape: f32[8,16,128], index: 0, kind: input, shape index: {}]
  %s1 = inlined_call_operand.vmem [shape: f32[16,16], index: 1, kind: input, shape index: {}]
  %s2 = inlined_call_operand.vmem [shape: f32[16,16], index: 2, kind: input, shape index: {}]
  %s3 = inlined_call_operand.vmem [shape: f32[8,16,128], index: 3, kind: output, shape index: {}]
  %s4 = sld [smem:[#allocation0]]
  $region22: #{mvact_blades_major.1} parent=0
    _
  %s6 = ssub.s32 1, %s4
  %s7 = scalar_select 0, %s6, %s4
  // Predicated region
  $region2: #{mvact_blades_major.1} parent=0 // pred_check
    _
  $region3: #{mvact_blades_major.1} parent=0 // pred_check_branch
    %9 = sbr.rel (0) target = $region5
  $region4: #{mvact_blades_major.1} parent=0 // pred_region
    _
  $region5: #{mvact_blades_major.1} parent=0 // pred_fallthru
    _
  // Predicated region
  $region6: #{mvact_blades_major.1} parent=0 // pred_check
    _
  $region7: #{mvact_blades_major.1} parent=0 // pred_check_branch
    %11 = sbr.rel (0) target = $region9
  $region8: #{mvact_blades_major.1} parent=0 // pred_region
    _
  $region9: #{mvact_blades_major.1} parent=0 // pred_fallthru
    _
  // Predicated region
  $region10: #{mvact_blades_major.1} parent=0 // pred_check
    _
  $region11: #{mvact_blades_major.1} parent=0 // pred_check_branch
    %13 = sbr.rel (0) target = $region13
  $region12: #{mvact_blades_major.1} parent=0 // pred_region
    _
  $region13: #{mvact_blades_major.1} parent=0 // pred_fallthru
    _
  %v14 = vld [vmem:[%s1] sm:$0xff]
  %v15 = vld [vmem:[%s1 + $0x8] sm:$0xff]
  %v16 = vld [vmem:[%s2] sm:$0xff]
  %v17 = vld [vmem:[%s2 + $0x8] sm:$0xff]
  %v18 = vld [vmem:[%s0] sm:$0xff]
  %v19 = vld [vmem:[%s0 + $0x8] sm:$0xff]
  %vm20 = vcmask 130048
  %v22 = vsel %vm20, %v14, 0
  %v25 = vsel %vm20, %v15, 0
  %27 = vmatprep.subr.mxu0 0.0
  %28 = vmatpush1.msra.mxu0 %v18
  %29 = vmatprep.subr.mxu0 0.0
  %30 = vmatpush1.msra.mxu0 %v19
  %31 = vmatprep.subr.mxu0 0.0
  %32 = vmatpush1.msra.mxu0 0.0
  %33 = vmatprep.subr.mxu0 0.0
  %34 = vmatpush1.msra.mxu0 0.0
  %35 = vmatprep.subr.mxu0 0.0
  %36 = vmatpush1.msra.mxu0 0.0
  %37 = vmatprep.subr.mxu0 0.0
  %38 = vmatpush1.msra.mxu0 0.0
  %39 = vmatprep.subr.mxu0 0.0
  %40 = vmatpush1.msra.mxu0 0.0
  %41 = vmatprep.subr.mxu0 0.0
  %42 = vmatpush1.msra.mxu0 0.0
  %43 = vmatprep.subr.mxu0 0.0
  %44 = vmatpush1.msra.mxu0 0.0
  %45 = vmatprep.subr.mxu0 0.0
  %46 = vmatpush1.msra.mxu0 0.0
  %47 = vmatprep.subr.mxu0 0.0
  %48 = vmatpush1.msra.mxu0 0.0
  %49 = vmatprep.subr.mxu0 0.0
  %50 = vmatpush1.msra.mxu0 0.0
  %51 = vmatprep.subr.mxu0 0.0
  %52 = vmatpush1.msra.mxu0 0.0
  %53 = vmatprep.subr.mxu0 0.0
  %54 = vmatpush1.msra.mxu0 0.0
  %55 = vmatprep.subr.mxu0 0.0
  %56 = vmatpush1.msra.mxu0 0.0
  %57 = vmatprep.subr.mxu0 0.0
  %58 = vmatpush1.msra.mxu0 0.0
  %59 = vmatprep.subr.mxu0 0.0
  %60 = vmatpush1.msra.mxu0 0.0
  %61 = vmatprep.subr.mxu0 0.0
  %62 = vmatpush1.msra.mxu0 0.0
  %63 = vmatprep.subr.mxu0 0.0
  %64 = vmatpush1.msra.mxu0 0.0
  %65 = vmatprep.subr.mxu0 0.0
  %66 = vmatpush1.msra.mxu0 0.0
  %67 = vmatprep.subr.mxu0 0.0
  %68 = vmatpush1.msra.mxu0 0.0
  %69 = vmatprep.subr.mxu0 0.0
  %70 = vmatpush1.msra.mxu0 0.0
  %71 = vmatprep.subr.mxu0 0.0
  %72 = vmatpush1.msra.mxu0 0.0
  %73 = vmatprep.subr.mxu0 0.0
  %74 = vmatpush1.msra.mxu0 0.0
  %75 = vmatprep.subr.mxu0 0.0
  %76 = vmatpush1.msra.mxu0 0.0
  %77 = vmatprep.subr.mxu0 0.0
  %78 = vmatpush1.msra.mxu0 0.0
  %79 = vmatprep.subr.mxu0 0.0
  %80 = vmatpush1.msra.mxu0 0.0
  %81 = vmatprep.subr.mxu0 0.0
  %82 = vmatpush1.msra.mxu0 0.0
  %83 = vmatprep.subr.mxu0 0.0
  %84 = vmatpush1.msra.mxu0 0.0
  %85 = vmatprep.subr.mxu0 0.0
  %86 = vmatpush1.msra.mxu0 0.0
  %87 = vmatprep.subr.mxu0 0.0
  %88 = vmatpush1.msra.mxu0 0.0
  %89 = vmatprep.subr.mxu0 0.0
  %90 = vmatpush1.msra.mxu0 0.0
  %91 = vmatprep.mubr.f32.mxu0 0.0
  %92 = vmatmul.mubr.f32.gmra.mrb[0].mxu0 %v22
  %v93 = vpop.f32.mrb[0].mxu0
  %v94 = vadd.f32 0.0, %v93
  %v95 = vpop.f32.mrb[0].mxu0
  %96 = vmatprep.mubr.f32.mxu0 0.0
  %97 = vmatmul.mubr.f32.gmra.mrb[0].mxu0 %v25
  %v98 = vpop.f32.mrb[0].mxu0
  %v99 = vadd.f32 0.0, %v98
  %v100 = vpop.f32.mrb[0].mxu0
  %101 = vdwg.mxu0
  %v103 = vsel %vm20, %v16, 0
  %v106 = vsel %vm20, %v17, 0
  %108 = vmatprep.subr.mxu0 0.0
  %109 = vmatpush1.msra.mxu0 %v18
  %110 = vmatprep.subr.mxu0 0.0
  %111 = vmatpush1.msra.mxu0 %v19
  %112 = vmatprep.subr.mxu0 0.0
  %113 = vmatpush1.msra.mxu0 0.0
  %114 = vmatprep.subr.mxu0 0.0
  %115 = vmatpush1.msra.mxu0 0.0
  %116 = vmatprep.subr.mxu0 0.0
  %117 = vmatpush1.msra.mxu0 0.0
  %118 = vmatprep.subr.mxu0 0.0
  %119 = vmatpush1.msra.mxu0 0.0
  %120 = vmatprep.subr.mxu0 0.0
  %121 = vmatpush1.msra.mxu0 0.0
  %122 = vmatprep.subr.mxu0 0.0
  %123 = vmatpush1.msra.mxu0 0.0
  %124 = vmatprep.subr.mxu0 0.0
  %125 = vmatpush1.msra.mxu0 0.0
  %126 = vmatprep.subr.mxu0 0.0
  %127 = vmatpush1.msra.mxu0 0.0
  %128 = vmatprep.subr.mxu0 0.0
  %129 = vmatpush1.msra.mxu0 0.0
  %130 = vmatprep.subr.mxu0 0.0
  %131 = vmatpush1.msra.mxu0 0.0
  %132 = vmatprep.subr.mxu0 0.0
  %133 = vmatpush1.msra.mxu0 0.0
  %134 = vmatprep.subr.mxu0 0.0
  %135 = vmatpush1.msra.mxu0 0.0
  %136 = vmatprep.subr.mxu0 0.0
  %137 = vmatpush1.msra.mxu0 0.0
  %138 = vmatprep.subr.mxu0 0.0
  %139 = vmatpush1.msra.mxu0 0.0
  %140 = vmatprep.subr.mxu0 0.0
  %141 = vmatpush1.msra.mxu0 0.0
  %142 = vmatprep.subr.mxu0 0.0
  %143 = vmatpush1.msra.mxu0 0.0
  %144 = vmatprep.subr.mxu0 0.0
  %145 = vmatpush1.msra.mxu0 0.0
  %146 = vmatprep.subr.mxu0 0.0
  %147 = vmatpush1.msra.mxu0 0.0
  %148 = vmatprep.subr.mxu0 0.0
  %149 = vmatpush1.msra.mxu0 0.0
  %150 = vmatprep.subr.mxu0 0.0
  %151 = vmatpush1.msra.mxu0 0.0
  %152 = vmatprep.subr.mxu0 0.0
  %153 = vmatpush1.msra.mxu0 0.0
  %154 = vmatprep.subr.mxu0 0.0
  %155 = vmatpush1.msra.mxu0 0.0
  %156 = vmatprep.subr.mxu0 0.0
  %157 = vmatpush1.msra.mxu0 0.0
  %158 = vmatprep.subr.mxu0 0.0
  %159 = vmatpush1.msra.mxu0 0.0
  %160 = vmatprep.subr.mxu0 0.0
  %161 = vmatpush1.msra.mxu0 0.0
  %162 = vmatprep.subr.mxu0 0.0
  %163 = vmatpush1.msra.mxu0 0.0
  %164 = vmatprep.subr.mxu0 0.0
  %165 = vmatpush1.msra.mxu0 0.0
  %166 = vmatprep.subr.mxu0 0.0
  %167 = vmatpush1.msra.mxu0 0.0
  %168 = vmatprep.subr.mxu0 0.0
  %169 = vmatpush1.msra.mxu0 0.0
  %170 = vmatprep.subr.mxu0 0.0
  %171 = vmatpush1.msra.mxu0 0.0
  %172 = vmatprep.mubr.f32.mxu0 0.0
  %173 = vmatmul.mubr.f32.gmra.mrb[0].mxu0 %v103
  %v174 = vpop.f32.mrb[0].mxu0
  %v175 = vadd.f32 0.0, %v174
  %v176 = vpop.f32.mrb[0].mxu0
  %177 = vmatprep.mubr.f32.mxu0 0.0
  %178 = vmatmul.mubr.f32.gmra.mrb[0].mxu0 %v106
  %v179 = vpop.f32.mrb[0].mxu0
  %v180 = vadd.f32 0.0, %v179
  %v181 = vpop.f32.mrb[0].mxu0
  %182 = vdwg.mxu0
  %183 = vst [vmem:[%s3] sm:$0xff] %v94
  %184 = vst [vmem:[%s3 + $0x8] sm:$0xff] %v99
  %185 = vst [vmem:[#allocation2] sm:$0xff] %v175
  %186 = vst [vmem:[#allocation2 + $0x8] sm:$0xff] %v180
  %v187 = vmul.f32 %v94, %v175
  %v188 = vmul.f32 %v99, %v180
  %v189 = vadd.f32 %v187, 0.0
  %v190 = vadd.f32 %v188, 0.0
  %v191 = vmul.f32 %v175, %v175
  %v192 = vmul.f32 %v180, %v180
  %v193 = vadd.f32 %v191, 0.0
  %v194 = vadd.f32 %v192, 0.0
  %s195 = sadd.s32 0, 16
  %s196 = scalar_lea.vmem %s0, %s195
  %v197 = vld [vmem:[%s196] sm:$0xff]
  %v198 = vld [vmem:[%s196 + $0x8] sm:$0xff]
  %199 = vmatprep.subr.mxu0 0.0
  %200 = vmatpush1.msra.mxu0 %v197
  %201 = vmatprep.subr.mxu0 0.0
  %202 = vmatpush1.msra.mxu0 %v198
  %203 = vmatprep.subr.mxu0 0.0
  %204 = vmatpush1.msra.mxu0 0.0
  %205 = vmatprep.subr.mxu0 0.0
  %206 = vmatpush1.msra.mxu0 0.0
  %207 = vmatprep.subr.mxu0 0.0
  %208 = vmatpush1.msra.mxu0 0.0
  %209 = vmatprep.subr.mxu0 0.0
  %210 = vmatpush1.msra.mxu0 0.0
  %211 = vmatprep.subr.mxu0 0.0
  %212 = vmatpush1.msra.mxu0 0.0
  %213 = vmatprep.subr.mxu0 0.0
  %214 = vmatpush1.msra.mxu0 0.0
  %215 = vmatprep.subr.mxu0 0.0
  %216 = vmatpush1.msra.mxu0 0.0
  %217 = vmatprep.subr.mxu0 0.0
  %218 = vmatpush1.msra.mxu0 0.0
  %219 = vmatprep.subr.mxu0 0.0
  %220 = vmatpush1.msra.mxu0 0.0
  %221 = vmatprep.subr.mxu0 0.0
  %222 = vmatpush1.msra.mxu0 0.0
  %223 = vmatprep.subr.mxu0 0.0
  %224 = vmatpush1.msra.mxu0 0.0
  %225 = vmatprep.subr.mxu0 0.0
  %226 = vmatpush1.msra.mxu0 0.0
  %227 = vmatprep.subr.mxu0 0.0
  %228 = vmatpush1.msra.mxu0 0.0
  %229 = vmatprep.subr.mxu0 0.0
  %230 = vmatpush1.msra.mxu0 0.0
  %231 = vmatprep.subr.mxu0 0.0
  %232 = vmatpush1.msra.mxu0 0.0
  %233 = vmatprep.subr.mxu0 0.0
  %234 = vmatpush1.msra.mxu0 0.0
  %235 = vmatprep.subr.mxu0 0.0
  %236 = vmatpush1.msra.mxu0 0.0
  %237 = vmatprep.subr.mxu0 0.0
  %238 = vmatpush1.msra.mxu0 0.0
  %239 = vmatprep.subr.mxu0 0.0
  %240 = vmatpush1.msra.mxu0 0.0
  %241 = vmatprep.subr.mxu0 0.0
  %242 = vmatpush1.msra.mxu0 0.0
  %243 = vmatprep.subr.mxu0 0.0
  %244 = vmatpush1.msra.mxu0 0.0
  %245 = vmatprep.subr.mxu0 0.0
  %246 = vmatpush1.msra.mxu0 0.0
  %247 = vmatprep.subr.mxu0 0.0
  %248 = vmatpush1.msra.mxu0 0.0
  %249 = vmatprep.subr.mxu0 0.0
  %250 = vmatpush1.msra.mxu0 0.0
  %251 = vmatprep.subr.mxu0 0.0
  %252 = vmatpush1.msra.mxu0 0.0
  %253 = vmatprep.subr.mxu0 0.0
  %254 = vmatpush1.msra.mxu0 0.0
  %255 = vmatprep.subr.mxu0 0.0
  %256 = vmatpush1.msra.mxu0 0.0
  %257 = vmatprep.subr.mxu0 0.0
  %258 = vmatpush1.msra.mxu0 0.0
  %259 = vmatprep.subr.mxu0 0.0
  %260 = vmatpush1.msra.mxu0 0.0
  %261 = vmatprep.subr.mxu0 0.0
  %262 = vmatpush1.msra.mxu0 0.0
  %263 = vmatprep.mubr.f32.mxu0 0.0
  %264 = vmatmul.mubr.f32.gmra.mrb[0].mxu0 %v22
  %v265 = vpop.f32.mrb[0].mxu0
  %v266 = vadd.f32 0.0, %v265
  %v267 = vpop.f32.mrb[0].mxu0
  %268 = vmatprep.mubr.f32.mxu0 0.0
  %269 = vmatmul.mubr.f32.gmra.mrb[0].mxu0 %v25
  %v270 = vpop.f32.mrb[0].mxu0
  %v271 = vadd.f32 0.0, %v270
  %v272 = vpop.f32.mrb[0].mxu0
  %273 = vdwg.mxu0
  %274 = vmatprep.subr.mxu0 0.0
  %275 = vmatpush1.msra.mxu0 %v197
  %276 = vmatprep.subr.mxu0 0.0
  %277 = vmatpush1.msra.mxu0 %v198
  %278 = vmatprep.subr.mxu0 0.0
  %279 = vmatpush1.msra.mxu0 0.0
  %280 = vmatprep.subr.mxu0 0.0
  %281 = vmatpush1.msra.mxu0 0.0
  %282 = vmatprep.subr.mxu0 0.0
  %283 = vmatpush1.msra.mxu0 0.0
  %284 = vmatprep.subr.mxu0 0.0
  %285 = vmatpush1.msra.mxu0 0.0
  %286 = vmatprep.subr.mxu0 0.0
  %287 = vmatpush1.msra.mxu0 0.0
  %288 = vmatprep.subr.mxu0 0.0
  %289 = vmatpush1.msra.mxu0 0.0
  %290 = vmatprep.subr.mxu0 0.0
  %291 = vmatpush1.msra.mxu0 0.0
  %292 = vmatprep.subr.mxu0 0.0
  %293 = vmatpush1.msra.mxu0 0.0
  %294 = vmatprep.subr.mxu0 0.0
  %295 = vmatpush1.msra.mxu0 0.0
  %296 = vmatprep.subr.mxu0 0.0
  %297 = vmatpush1.msra.mxu0 0.0
  %298 = vmatprep.subr.mxu0 0.0
  %299 = vmatpush1.msra.mxu0 0.0
  %300 = vmatprep.subr.mxu0 0.0
  %301 = vmatpush1.msra.mxu0 0.0
  %302 = vmatprep.subr.mxu0 0.0
  %303 = vmatpush1.msra.mxu0 0.0
  %304 = vmatprep.subr.mxu0 0.0
  %305 = vmatpush1.msra.mxu0 0.0
  %306 = vmatprep.subr.mxu0 0.0
  %307 = vmatpush1.msra.mxu0 0.0
  %308 = vmatprep.subr.mxu0 0.0
  %309 = vmatpush1.msra.mxu0 0.0
  %310 = vmatprep.subr.mxu0 0.0
  %311 = vmatpush1.msra.mxu0 0.0
  %312 = vmatprep.subr.mxu0 0.0
  %313 = vmatpush1.msra.mxu0 0.0
  %314 = vmatprep.subr.mxu0 0.0
  %315 = vmatpush1.msra.mxu0 0.0
  %316 = vmatprep.subr.mxu0 0.0
  %317 = vmatpush1.msra.mxu0 0.0
  %318 = vmatprep.subr.mxu0 0.0
  %319 = vmatpush1.msra.mxu0 0.0
  %320 = vmatprep.subr.mxu0 0.0
  %321 = vmatpush1.msra.mxu0 0.0
  %322 = vmatprep.subr.mxu0 0.0
  %323 = vmatpush1.msra.mxu0 0.0
  %324 = vmatprep.subr.mxu0 0.0
  %325 = vmatpush1.msra.mxu0 0.0
  %326 = vmatprep.subr.mxu0 0.0
  %327 = vmatpush1.msra.mxu0 0.0
  %328 = vmatprep.subr.mxu0 0.0
  %329 = vmatpush1.msra.mxu0 0.0
  %330 = vmatprep.subr.mxu0 0.0
  %331 = vmatpush1.msra.mxu0 0.0
  %332 = vmatprep.subr.mxu0 0.0
  %333 = vmatpush1.msra.mxu0 0.0
  %334 = vmatprep.subr.mxu0 0.0
  %335 = vmatpush1.msra.mxu0 0.0
  %336 = vmatprep.subr.mxu0 0.0
  %337 = vmatpush1.msra.mxu0 0.0
  %338 = vmatprep.mubr.f32.mxu0 0.0
  %339 = vmatmul.mubr.f32.gmra.mrb[0].mxu0 %v103
  %v340 = vpop.f32.mrb[0].mxu0
  %v341 = vadd.f32 0.0, %v340
  %v342 = vpop.f32.mrb[0].mxu0
  %343 = vmatprep.mubr.f32.mxu0 0.0
  %344 = vmatmul.mubr.f32.gmra.mrb[0].mxu0 %v106
  %v345 = vpop.f32.mrb[0].mxu0
  %v346 = vadd.f32 0.0, %v345
  %v347 = vpop.f32.mrb[0].mxu0
  %348 = vdwg.mxu0
  %s349 = scalar_lea.vmem %s3, %s195
  %350 = vst [vmem:[%s349] sm:$0xff] %v266
  %351 = vst [vmem:[%s349 + $0x8] sm:$0xff] %v271
  %s352 = scalar_lea.vmem [#allocation2], 16
  %353 = vst [vmem:[%s352] sm:$0xff] %v341
  %354 = vst [vmem:[%s352 + $0x8] sm:$0xff] %v346
  %v355 = vmul.f32 %v266, %v341
  %v356 = vmul.f32 %v271, %v346
  %v357 = vadd.f32 %v189, %v355
  %v358 = vadd.f32 %v190, %v356
  %v359 = vmul.f32 %v341, %v341
  %v360 = vmul.f32 %v346, %v346
  %v361 = vadd.f32 %v193, %v359
  %v362 = vadd.f32 %v194, %v360
  %s363 = sadd.s32 0, 32
  %s364 = scalar_lea.vmem %s0, %s363
  %v365 = vld [vmem:[%s364] sm:$0xff]
  %v366 = vld [vmem:[%s364 + $0x8] sm:$0xff]
  %367 = vmatprep.subr.mxu0 0.0
  %368 = vmatpush1.msra.mxu0 %v365
  %369 = vmatprep.subr.mxu0 0.0
  %370 = vmatpush1.msra.mxu0 %v366
  %371 = vmatprep.subr.mxu0 0.0
  %372 = vmatpush1.msra.mxu0 0.0
  %373 = vmatprep.subr.mxu0 0.0
  %374 = vmatpush1.msra.mxu0 0.0
  %375 = vmatprep.subr.mxu0 0.0
  %376 = vmatpush1.msra.mxu0 0.0
  %377 = vmatprep.subr.mxu0 0.0
  %378 = vmatpush1.msra.mxu0 0.0
  %379 = vmatprep.subr.mxu0 0.0
  %380 = vmatpush1.msra.mxu0 0.0
  %381 = vmatprep.subr.mxu0 0.0
  %382 = vmatpush1.msra.mxu0 0.0
  %383 = vmatprep.subr.mxu0 0.0
  %384 = vmatpush1.msra.mxu0 0.0
  %385 = vmatprep.subr.mxu0 0.0
  %386 = vmatpush1.msra.mxu0 0.0
  %387 = vmatprep.subr.mxu0 0.0
  %388 = vmatpush1.msra.mxu0 0.0
  %389 = vmatprep.subr.mxu0 0.0
  %390 = vmatpush1.msra.mxu0 0.0
  %391 = vmatprep.subr.mxu0 0.0
  %392 = vmatpush1.msra.mxu0 0.0
  %393 = vmatprep.subr.mxu0 0.0
  %394 = vmatpush1.msra.mxu0 0.0
  %395 = vmatprep.subr.mxu0 0.0
  %396 = vmatpush1.msra.mxu0 0.0
  %397 = vmatprep.subr.mxu0 0.0
  %398 = vmatpush1.msra.mxu0 0.0
  %399 = vmatprep.subr.mxu0 0.0
  %400 = vmatpush1.msra.mxu0 0.0
  %401 = vmatprep.subr.mxu0 0.0
  %402 = vmatpush1.msra.mxu0 0.0
  %403 = vmatprep.subr.mxu0 0.0
  %404 = vmatpush1.msra.mxu0 0.0
  %405 = vmatprep.subr.mxu0 0.0
  %406 = vmatpush1.msra.mxu0 0.0
  %407 = vmatprep.subr.mxu0 0.0
  %408 = vmatpush1.msra.mxu0 0.0
  %409 = vmatprep.subr.mxu0 0.0
  %410 = vmatpush1.msra.mxu0 0.0
  %411 = vmatprep.subr.mxu0 0.0
  %412 = vmatpush1.msra.mxu0 0.0
  %413 = vmatprep.subr.mxu0 0.0
  %414 = vmatpush1.msra.mxu0 0.0
  %415 = vmatprep.subr.mxu0 0.0
  %416 = vmatpush1.msra.mxu0 0.0
  %417 = vmatprep.subr.mxu0 0.0
  %418 = vmatpush1.msra.mxu0 0.0
  %419 = vmatprep.subr.mxu0 0.0
  %420 = vmatpush1.msra.mxu0 0.0
  %421 = vmatprep.subr.mxu0 0.0
  %422 = vmatpush1.msra.mxu0 0.0
  %423 = vmatprep.subr.mxu0 0.0
  %424 = vmatpush1.msra.mxu0 0.0
  %425 = vmatprep.subr.mxu0 0.0
  %426 = vmatpush1.msra.mxu0 0.0
  %427 = vmatprep.subr.mxu0 0.0
  %428 = vmatpush1.msra.mxu0 0.0
  %429 = vmatprep.subr.mxu0 0.0
  %430 = vmatpush1.msra.mxu0 0.0
  %431 = vmatprep.mubr.f32.mxu0 0.0
  %432 = vmatmul.mubr.f32.gmra.mrb[0].mxu0 %v22
  %v433 = vpop.f32.mrb[0].mxu0
  %v434 = vadd.f32 0.0, %v433
  %v435 = vpop.f32.mrb[0].mxu0
  %436 = vmatprep.mubr.f32.mxu0 0.0
  %437 = vmatmul.mubr.f32.gmra.mrb[0].mxu0 %v25
  %v438 = vpop.f32.mrb[0].mxu0
  %v439 = vadd.f32 0.0, %v438
  %v440 = vpop.f32.mrb[0].mxu0
  %441 = vdwg.mxu0
  %442 = vmatprep.subr.mxu0 0.0
  %443 = vmatpush1.msra.mxu0 %v365
  %444 = vmatprep.subr.mxu0 0.0
  %445 = vmatpush1.msra.mxu0 %v366
  %446 = vmatprep.subr.mxu0 0.0
  %447 = vmatpush1.msra.mxu0 0.0
  %448 = vmatprep.subr.mxu0 0.0
  %449 = vmatpush1.msra.mxu0 0.0
  %450 = vmatprep.subr.mxu0 0.0
  %451 = vmatpush1.msra.mxu0 0.0
  %452 = vmatprep.subr.mxu0 0.0
  %453 = vmatpush1.msra.mxu0 0.0
  %454 = vmatprep.subr.mxu0 0.0
  %455 = vmatpush1.msra.mxu0 0.0
  %456 = vmatprep.subr.mxu0 0.0
  %457 = vmatpush1.msra.mxu0 0.0
  %458 = vmatprep.subr.mxu0 0.0
  %459 = vmatpush1.msra.mxu0 0.0
  %460 = vmatprep.subr.mxu0 0.0
  %461 = vmatpush1.msra.mxu0 0.0
  %462 = vmatprep.subr.mxu0 0.0
  %463 = vmatpush1.msra.mxu0 0.0
  %464 = vmatprep.subr.mxu0 0.0
  %465 = vmatpush1.msra.mxu0 0.0
  %466 = vmatprep.subr.mxu0 0.0
  %467 = vmatpush1.msra.mxu0 0.0
  %468 = vmatprep.subr.mxu0 0.0
  %469 = vmatpush1.msra.mxu0 0.0
  %470 = vmatprep.subr.mxu0 0.0
  %471 = vmatpush1.msra.mxu0 0.0
  %472 = vmatprep.subr.mxu0 0.0
  %473 = vmatpush1.msra.mxu0 0.0
  %474 = vmatprep.subr.mxu0 0.0
  %475 = vmatpush1.msra.mxu0 0.0
  %476 = vmatprep.subr.mxu0 0.0
  %477 = vmatpush1.msra.mxu0 0.0
  %478 = vmatprep.subr.mxu0 0.0
  %479 = vmatpush1.msra.mxu0 0.0
  %480 = vmatprep.subr.mxu0 0.0
  %481 = vmatpush1.msra.mxu0 0.0
  %482 = vmatprep.subr.mxu0 0.0
  %483 = vmatpush1.msra.mxu0 0.0
  %484 = vmatprep.subr.mxu0 0.0
  %485 = vmatpush1.msra.mxu0 0.0
  %486 = vmatprep.subr.mxu0 0.0
  %487 = vmatpush1.msra.mxu0 0.0
  %488 = vmatprep.subr.mxu0 0.0
  %489 = vmatpush1.msra.mxu0 0.0
  %490 = vmatprep.subr.mxu0 0.0
  %491 = vmatpush1.msra.mxu0 0.0
  %492 = vmatprep.subr.mxu0 0.0
  %493 = vmatpush1.msra.mxu0 0.0
  %494 = vmatprep.subr.mxu0 0.0
  %495 = vmatpush1.msra.mxu0 0.0
  %496 = vmatprep.subr.mxu0 0.0
  %497 = vmatpush1.msra.mxu0 0.0
  %498 = vmatprep.subr.mxu0 0.0
  %499 = vmatpush1.msra.mxu0 0.0
  %500 = vmatprep.subr.mxu0 0.0
  %501 = vmatpush1.msra.mxu0 0.0
  %502 = vmatprep.subr.mxu0 0.0
  %503 = vmatpush1.msra.mxu0 0.0
  %504 = vmatprep.subr.mxu0 0.0
  %505 = vmatpush1.msra.mxu0 0.0
  %506 = vmatprep.mubr.f32.mxu0 0.0
  %507 = vmatmul.mubr.f32.gmra.mrb[0].mxu0 %v103
  %v508 = vpop.f32.mrb[0].mxu0
  %v509 = vadd.f32 0.0, %v508
  %v510 = vpop.f32.mrb[0].mxu0
  %511 = vmatprep.mubr.f32.mxu0 0.0
  %512 = vmatmul.mubr.f32.gmra.mrb[0].mxu0 %v106
  %v513 = vpop.f32.mrb[0].mxu0
  %v514 = vadd.f32 0.0, %v513
  %v515 = vpop.f32.mrb[0].mxu0
  %516 = vdwg.mxu0
  %s517 = scalar_lea.vmem %s3, %s363
  %518 = vst [vmem:[%s517] sm:$0xff] %v434
  %519 = vst [vmem:[%s517 + $0x8] sm:$0xff] %v439
  %s520 = scalar_lea.vmem [#allocation2], 32
  %521 = vst [vmem:[%s520] sm:$0xff] %v509
  %522 = vst [vmem:[%s520 + $0x8] sm:$0xff] %v514
  %v523 = vmul.f32 %v434, %v509
  %v524 = vmul.f32 %v439, %v514
  %v525 = vadd.f32 %v357, %v523
  %v526 = vadd.f32 %v358, %v524
  %v527 = vmul.f32 %v509, %v509
  %v528 = vmul.f32 %v514, %v514
  %v529 = vadd.f32 %v361, %v527
  %v530 = vadd.f32 %v362, %v528
  %s531 = sadd.s32 0, 48
  %s532 = scalar_lea.vmem %s0, %s531
  %v533 = vld [vmem:[%s532] sm:$0xff]
  %v534 = vld [vmem:[%s532 + $0x8] sm:$0xff]
  %535 = vmatprep.subr.mxu0 0.0
  %536 = vmatpush1.msra.mxu0 %v533
  %537 = vmatprep.subr.mxu0 0.0
  %538 = vmatpush1.msra.mxu0 %v534
  %539 = vmatprep.subr.mxu0 0.0
  %540 = vmatpush1.msra.mxu0 0.0
  %541 = vmatprep.subr.mxu0 0.0
  %542 = vmatpush1.msra.mxu0 0.0
  %543 = vmatprep.subr.mxu0 0.0
  %544 = vmatpush1.msra.mxu0 0.0
  %545 = vmatprep.subr.mxu0 0.0
  %546 = vmatpush1.msra.mxu0 0.0
  %547 = vmatprep.subr.mxu0 0.0
  %548 = vmatpush1.msra.mxu0 0.0
  %549 = vmatprep.subr.mxu0 0.0
  %550 = vmatpush1.msra.mxu0 0.0
  %551 = vmatprep.subr.mxu0 0.0
  %552 = vmatpush1.msra.mxu0 0.0
  %553 = vmatprep.subr.mxu0 0.0
  %554 = vmatpush1.msra.mxu0 0.0
  %555 = vmatprep.subr.mxu0 0.0
  %556 = vmatpush1.msra.mxu0 0.0
  %557 = vmatprep.subr.mxu0 0.0
  %558 = vmatpush1.msra.mxu0 0.0
  %559 = vmatprep.subr.mxu0 0.0
  %560 = vmatpush1.msra.mxu0 0.0
  %561 = vmatprep.subr.mxu0 0.0
  %562 = vmatpush1.msra.mxu0 0.0
  %563 = vmatprep.subr.mxu0 0.0
  %564 = vmatpush1.msra.mxu0 0.0
  %565 = vmatprep.subr.mxu0 0.0
  %566 = vmatpush1.msra.mxu0 0.0
  %567 = vmatprep.subr.mxu0 0.0
  %568 = vmatpush1.msra.mxu0 0.0
  %569 = vmatprep.subr.mxu0 0.0
  %570 = vmatpush1.msra.mxu0 0.0
  %571 = vmatprep.subr.mxu0 0.0
  %572 = vmatpush1.msra.mxu0 0.0
  %573 = vmatprep.subr.mxu0 0.0
  %574 = vmatpush1.msra.mxu0 0.0
  %575 = vmatprep.subr.mxu0 0.0
  %576 = vmatpush1.msra.mxu0 0.0
  %577 = vmatprep.subr.mxu0 0.0
  %578 = vmatpush1.msra.mxu0 0.0
  %579 = vmatprep.subr.mxu0 0.0
  %580 = vmatpush1.msra.mxu0 0.0
  %581 = vmatprep.subr.mxu0 0.0
  %582 = vmatpush1.msra.mxu0 0.0
  %583 = vmatprep.subr.mxu0 0.0
  %584 = vmatpush1.msra.mxu0 0.0
  %585 = vmatprep.subr.mxu0 0.0
  %586 = vmatpush1.msra.mxu0 0.0
  %587 = vmatprep.subr.mxu0 0.0
  %588 = vmatpush1.msra.mxu0 0.0
  %589 = vmatprep.subr.mxu0 0.0
  %590 = vmatpush1.msra.mxu0 0.0
  %591 = vmatprep.subr.mxu0 0.0
  %592 = vmatpush1.msra.mxu0 0.0
  %593 = vmatprep.subr.mxu0 0.0
  %594 = vmatpush1.msra.mxu0 0.0
  %595 = vmatprep.subr.mxu0 0.0
  %596 = vmatpush1.msra.mxu0 0.0
  %597 = vmatprep.subr.mxu0 0.0
  %598 = vmatpush1.msra.mxu0 0.0
  %599 = vmatprep.mubr.f32.mxu0 0.0
  %600 = vmatmul.mubr.f32.gmra.mrb[0].mxu0 %v22
  %v601 = vpop.f32.mrb[0].mxu0
  %v602 = vadd.f32 0.0, %v601
  %v603 = vpop.f32.mrb[0].mxu0
  %604 = vmatprep.mubr.f32.mxu0 0.0
  %605 = vmatmul.mubr.f32.gmra.mrb[0].mxu0 %v25
  %v606 = vpop.f32.mrb[0].mxu0
  %v607 = vadd.f32 0.0, %v606
  %v608 = vpop.f32.mrb[0].mxu0
  %609 = vdwg.mxu0
  %610 = vmatprep.subr.mxu0 0.0
  %611 = vmatpush1.msra.mxu0 %v533
  %612 = vmatprep.subr.mxu0 0.0
  %613 = vmatpush1.msra.mxu0 %v534
  %614 = vmatprep.subr.mxu0 0.0
  %615 = vmatpush1.msra.mxu0 0.0
  %616 = vmatprep.subr.mxu0 0.0
  %617 = vmatpush1.msra.mxu0 0.0
  %618 = vmatprep.subr.mxu0 0.0
  %619 = vmatpush1.msra.mxu0 0.0
  %620 = vmatprep.subr.mxu0 0.0
  %621 = vmatpush1.msra.mxu0 0.0
  %622 = vmatprep.subr.mxu0 0.0
  %623 = vmatpush1.msra.mxu0 0.0
  %624 = vmatprep.subr.mxu0 0.0
  %625 = vmatpush1.msra.mxu0 0.0
  %626 = vmatprep.subr.mxu0 0.0
  %627 = vmatpush1.msra.mxu0 0.0
  %628 = vmatprep.subr.mxu0 0.0
  %629 = vmatpush1.msra.mxu0 0.0
  %630 = vmatprep.subr.mxu0 0.0
  %631 = vmatpush1.msra.mxu0 0.0
  %632 = vmatprep.subr.mxu0 0.0
  %633 = vmatpush1.msra.mxu0 0.0
  %634 = vmatprep.subr.mxu0 0.0
  %635 = vmatpush1.msra.mxu0 0.0
  %636 = vmatprep.subr.mxu0 0.0
  %637 = vmatpush1.msra.mxu0 0.0
  %638 = vmatprep.subr.mxu0 0.0
  %639 = vmatpush1.msra.mxu0 0.0
  %640 = vmatprep.subr.mxu0 0.0
  %641 = vmatpush1.msra.mxu0 0.0
  %642 = vmatprep.subr.mxu0 0.0
  %643 = vmatpush1.msra.mxu0 0.0
  %644 = vmatprep.subr.mxu0 0.0
  %645 = vmatpush1.msra.mxu0 0.0
  %646 = vmatprep.subr.mxu0 0.0
  %647 = vmatpush1.msra.mxu0 0.0
  %648 = vmatprep.subr.mxu0 0.0
  %649 = vmatpush1.msra.mxu0 0.0
  %650 = vmatprep.subr.mxu0 0.0
  %651 = vmatpush1.msra.mxu0 0.0
  %652 = vmatprep.subr.mxu0 0.0
  %653 = vmatpush1.msra.mxu0 0.0
  %654 = vmatprep.subr.mxu0 0.0
  %655 = vmatpush1.msra.mxu0 0.0
  %656 = vmatprep.subr.mxu0 0.0
  %657 = vmatpush1.msra.mxu0 0.0
  %658 = vmatprep.subr.mxu0 0.0
  %659 = vmatpush1.msra.mxu0 0.0
  %660 = vmatprep.subr.mxu0 0.0
  %661 = vmatpush1.msra.mxu0 0.0
  %662 = vmatprep.subr.mxu0 0.0
  %663 = vmatpush1.msra.mxu0 0.0
  %664 = vmatprep.subr.mxu0 0.0
  %665 = vmatpush1.msra.mxu0 0.0
  %666 = vmatprep.subr.mxu0 0.0
  %667 = vmatpush1.msra.mxu0 0.0
  %668 = vmatprep.subr.mxu0 0.0
  %669 = vmatpush1.msra.mxu0 0.0
  %670 = vmatprep.subr.mxu0 0.0
  %671 = vmatpush1.msra.mxu0 0.0
  %672 = vmatprep.subr.mxu0 0.0
  %673 = vmatpush1.msra.mxu0 0.0
  %674 = vmatprep.mubr.f32.mxu0 0.0
  %675 = vmatmul.mubr.f32.gmra.mrb[0].mxu0 %v103
  %v676 = vpop.f32.mrb[0].mxu0
  %v677 = vadd.f32 0.0, %v676
  %v678 = vpop.f32.mrb[0].mxu0
  %679 = vmatprep.mubr.f32.mxu0 0.0
  %680 = vmatmul.mubr.f32.gmra.mrb[0].mxu0 %v106
  %v681 = vpop.f32.mrb[0].mxu0
  %v682 = vadd.f32 0.0, %v681
  %v683 = vpop.f32.mrb[0].mxu0
  %684 = vdwg.mxu0
  %s685 = scalar_lea.vmem %s3, %s531
  %686 = vst [vmem:[%s685] sm:$0xff] %v602
  %687 = vst [vmem:[%s685 + $0x8] sm:$0xff] %v607
  %s688 = scalar_lea.vmem [#allocation2], 48
  %689 = vst [vmem:[%s688] sm:$0xff] %v677
  %690 = vst [vmem:[%s688 + $0x8] sm:$0xff] %v682
  %v691 = vmul.f32 %v602, %v677
  %v692 = vmul.f32 %v607, %v682
  %v693 = vadd.f32 %v525, %v691
  %v694 = vadd.f32 %v526, %v692
  %v695 = vmul.f32 %v677, %v677
  %v696 = vmul.f32 %v682, %v682
  %v697 = vadd.f32 %v529, %v695
  %v698 = vadd.f32 %v530, %v696
  %s699 = sadd.s32 0, 64
  %s700 = scalar_lea.vmem %s0, %s699
  %v701 = vld [vmem:[%s700] sm:$0xff]
  %v702 = vld [vmem:[%s700 + $0x8] sm:$0xff]
  %703 = vmatprep.subr.mxu0 0.0
  %704 = vmatpush1.msra.mxu0 %v701
  %705 = vmatprep.subr.mxu0 0.0
  %706 = vmatpush1.msra.mxu0 %v702
  %707 = vmatprep.subr.mxu0 0.0
  %708 = vmatpush1.msra.mxu0 0.0
  %709 = vmatprep.subr.mxu0 0.0
  %710 = vmatpush1.msra.mxu0 0.0
  %711 = vmatprep.subr.mxu0 0.0
  %712 = vmatpush1.msra.mxu0 0.0
  %713 = vmatprep.subr.mxu0 0.0
  %714 = vmatpush1.msra.mxu0 0.0
  %715 = vmatprep.subr.mxu0 0.0
  %716 = vmatpush1.msra.mxu0 0.0
  %717 = vmatprep.subr.mxu0 0.0
  %718 = vmatpush1.msra.mxu0 0.0
  %719 = vmatprep.subr.mxu0 0.0
  %720 = vmatpush1.msra.mxu0 0.0
  %721 = vmatprep.subr.mxu0 0.0
  %722 = vmatpush1.msra.mxu0 0.0
  %723 = vmatprep.subr.mxu0 0.0
  %724 = vmatpush1.msra.mxu0 0.0
  %725 = vmatprep.subr.mxu0 0.0
  %726 = vmatpush1.msra.mxu0 0.0
  %727 = vmatprep.subr.mxu0 0.0
  %728 = vmatpush1.msra.mxu0 0.0
  %729 = vmatprep.subr.mxu0 0.0
  %730 = vmatpush1.msra.mxu0 0.0
  %731 = vmatprep.subr.mxu0 0.0
  %732 = vmatpush1.msra.mxu0 0.0
  %733 = vmatprep.subr.mxu0 0.0
  %734 = vmatpush1.msra.mxu0 0.0
  %735 = vmatprep.subr.mxu0 0.0
  %736 = vmatpush1.msra.mxu0 0.0
  %737 = vmatprep.subr.mxu0 0.0
  %738 = vmatpush1.msra.mxu0 0.0
  %739 = vmatprep.subr.mxu0 0.0
  %740 = vmatpush1.msra.mxu0 0.0
  %741 = vmatprep.subr.mxu0 0.0
  %742 = vmatpush1.msra.mxu0 0.0
  %743 = vmatprep.subr.mxu0 0.0
  %744 = vmatpush1.msra.mxu0 0.0
  %745 = vmatprep.subr.mxu0 0.0
  %746 = vmatpush1.msra.mxu0 0.0
  %747 = vmatprep.subr.mxu0 0.0
  %748 = vmatpush1.msra.mxu0 0.0
  %749 = vmatprep.subr.mxu0 0.0
  %750 = vmatpush1.msra.mxu0 0.0
  %751 = vmatprep.subr.mxu0 0.0
  %752 = vmatpush1.msra.mxu0 0.0
  %753 = vmatprep.subr.mxu0 0.0
  %754 = vmatpush1.msra.mxu0 0.0
  %755 = vmatprep.subr.mxu0 0.0
  %756 = vmatpush1.msra.mxu0 0.0
  %757 = vmatprep.subr.mxu0 0.0
  %758 = vmatpush1.msra.mxu0 0.0
  %759 = vmatprep.subr.mxu0 0.0
  %760 = vmatpush1.msra.mxu0 0.0
  %761 = vmatprep.subr.mxu0 0.0
  %762 = vmatpush1.msra.mxu0 0.0
  %763 = vmatprep.subr.mxu0 0.0
  %764 = vmatpush1.msra.mxu0 0.0
  %765 = vmatprep.subr.mxu0 0.0
  %766 = vmatpush1.msra.mxu0 0.0
  %767 = vmatprep.mubr.f32.mxu0 0.0
  %768 = vmatmul.mubr.f32.gmra.mrb[0].mxu0 %v22
  %v769 = vpop.f32.mrb[0].mxu0
  %v770 = vadd.f32 0.0, %v769
  %v771 = vpop.f32.mrb[0].mxu0
  %772 = vmatprep.mubr.f32.mxu0 0.0
  %773 = vmatmul.mubr.f32.gmra.mrb[0].mxu0 %v25
  %v774 = vpop.f32.mrb[0].mxu0
  %v775 = vadd.f32 0.0, %v774
  %v776 = vpop.f32.mrb[0].mxu0
  %777 = vdwg.mxu0
  %778 = vmatprep.subr.mxu0 0.0
  %779 = vmatpush1.msra.mxu0 %v701
  %780 = vmatprep.subr.mxu0 0.0
  %781 = vmatpush1.msra.mxu0 %v702
  %782 = vmatprep.subr.mxu0 0.0
  %783 = vmatpush1.msra.mxu0 0.0
  %784 = vmatprep.subr.mxu0 0.0
  %785 = vmatpush1.msra.mxu0 0.0
  %786 = vmatprep.subr.mxu0 0.0
  %787 = vmatpush1.msra.mxu0 0.0
  %788 = vmatprep.subr.mxu0 0.0
  %789 = vmatpush1.msra.mxu0 0.0
  %790 = vmatprep.subr.mxu0 0.0
  %791 = vmatpush1.msra.mxu0 0.0
  %792 = vmatprep.subr.mxu0 0.0
  %793 = vmatpush1.msra.mxu0 0.0
  %794 = vmatprep.subr.mxu0 0.0
  %795 = vmatpush1.msra.mxu0 0.0
  %796 = vmatprep.subr.mxu0 0.0
  %797 = vmatpush1.msra.mxu0 0.0
  %798 = vmatprep.subr.mxu0 0.0
  %799 = vmatpush1.msra.mxu0 0.0
  %800 = vmatprep.subr.mxu0 0.0
  %801 = vmatpush1.msra.mxu0 0.0
  %802 = vmatprep.subr.mxu0 0.0
  %803 = vmatpush1.msra.mxu0 0.0
  %804 = vmatprep.subr.mxu0 0.0
  %805 = vmatpush1.msra.mxu0 0.0
  %806 = vmatprep.subr.mxu0 0.0
  %807 = vmatpush1.msra.mxu0 0.0
  %808 = vmatprep.subr.mxu0 0.0
  %809 = vmatpush1.msra.mxu0 0.0
  %810 = vmatprep.subr.mxu0 0.0
  %811 = vmatpush1.msra.mxu0 0.0
  %812 = vmatprep.subr.mxu0 0.0
  %813 = vmatpush1.msra.mxu0 0.0
  %814 = vmatprep.subr.mxu0 0.0
  %815 = vmatpush1.msra.mxu0 0.0
  %816 = vmatprep.subr.mxu0 0.0
  %817 = vmatpush1.msra.mxu0 0.0
  %818 = vmatprep.subr.mxu0 0.0
  %819 = vmatpush1.msra.mxu0 0.0
  %820 = vmatprep.subr.mxu0 0.0
  %821 = vmatpush1.msra.mxu0 0.0
  %822 = vmatprep.subr.mxu0 0.0
  %823 = vmatpush1.msra.mxu0 0.0
  %824 = vmatprep.subr.mxu0 0.0
  %825 = vmatpush1.msra.mxu0 0.0
  %826 = vmatprep.subr.mxu0 0.0
  %827 = vmatpush1.msra.mxu0 0.0
  %828 = vmatprep.subr.mxu0 0.0
  %829 = vmatpush1.msra.mxu0 0.0
  %830 = vmatprep.subr.mxu0 0.0
  %831 = vmatpush1.msra.mxu0 0.0
  %832 = vmatprep.subr.mxu0 0.0
  %833 = vmatpush1.msra.mxu0 0.0
  %834 = vmatprep.subr.mxu0 0.0
  %835 = vmatpush1.msra.mxu0 0.0
  %836 = vmatprep.subr.mxu0 0.0
  %837 = vmatpush1.msra.mxu0 0.0
  %838 = vmatprep.subr.mxu0 0.0
  %839 = vmatpush1.msra.mxu0 0.0
  %840 = vmatprep.subr.mxu0 0.0
  %841 = vmatpush1.msra.mxu0 0.0
  %842 = vmatprep.mubr.f32.mxu0 0.0
  %843 = vmatmul.mubr.f32.gmra.mrb[0].mxu0 %v103
  %v844 = vpop.f32.mrb[0].mxu0
  %v845 = vadd.f32 0.0, %v844
  %v846 = vpop.f32.mrb[0].mxu0
  %847 = vmatprep.mubr.f32.mxu0 0.0
  %848 = vmatmul.mubr.f32.gmra.mrb[0].mxu0 %v106
  %v849 = vpop.f32.mrb[0].mxu0
  %v850 = vadd.f32 0.0, %v849
  %v851 = vpop.f32.mrb[0].mxu0
  %852 = vdwg.mxu0
  %s853 = scalar_lea.vmem %s3, %s699
  %854 = vst [vmem:[%s853] sm:$0xff] %v770
  %855 = vst [vmem:[%s853 + $0x8] sm:$0xff] %v775
  %s856 = scalar_lea.vmem [#allocation2], 64
  %857 = vst [vmem:[%s856] sm:$0xff] %v845
  %858 = vst [vmem:[%s856 + $0x8] sm:$0xff] %v850
  %v859 = vmul.f32 %v770, %v845
  %v860 = vmul.f32 %v775, %v850
  %v861 = vadd.f32 %v693, %v859
  %v862 = vadd.f32 %v694, %v860
  %v863 = vmul.f32 %v845, %v845
  %v864 = vmul.f32 %v850, %v850
  %v865 = vadd.f32 %v697, %v863
  %v866 = vadd.f32 %v698, %v864
  %s867 = sadd.s32 0, 80
  %s868 = scalar_lea.vmem %s0, %s867
  %v869 = vld [vmem:[%s868] sm:$0xff]
  %v870 = vld [vmem:[%s868 + $0x8] sm:$0xff]
  %871 = vmatprep.subr.mxu0 0.0
  %872 = vmatpush1.msra.mxu0 %v869
  %873 = vmatprep.subr.mxu0 0.0
  %874 = vmatpush1.msra.mxu0 %v870
  %875 = vmatprep.subr.mxu0 0.0
  %876 = vmatpush1.msra.mxu0 0.0
  %877 = vmatprep.subr.mxu0 0.0
  %878 = vmatpush1.msra.mxu0 0.0
  %879 = vmatprep.subr.mxu0 0.0
  %880 = vmatpush1.msra.mxu0 0.0
  %881 = vmatprep.subr.mxu0 0.0
  %882 = vmatpush1.msra.mxu0 0.0
  %883 = vmatprep.subr.mxu0 0.0
  %884 = vmatpush1.msra.mxu0 0.0
  %885 = vmatprep.subr.mxu0 0.0
  %886 = vmatpush1.msra.mxu0 0.0
  %887 = vmatprep.subr.mxu0 0.0
  %888 = vmatpush1.msra.mxu0 0.0
  %889 = vmatprep.subr.mxu0 0.0
  %890 = vmatpush1.msra.mxu0 0.0
  %891 = vmatprep.subr.mxu0 0.0
  %892 = vmatpush1.msra.mxu0 0.0
  %893 = vmatprep.subr.mxu0 0.0
  %894 = vmatpush1.msra.mxu0 0.0
  %895 = vmatprep.subr.mxu0 0.0
  %896 = vmatpush1.msra.mxu0 0.0
  %897 = vmatprep.subr.mxu0 0.0
  %898 = vmatpush1.msra.mxu0 0.0
  %899 = vmatprep.subr.mxu0 0.0
  %900 = vmatpush1.msra.mxu0 0.0
  %901 = vmatprep.subr.mxu0 0.0
  %902 = vmatpush1.msra.mxu0 0.0
  %903 = vmatprep.subr.mxu0 0.0
  %904 = vmatpush1.msra.mxu0 0.0
  %905 = vmatprep.subr.mxu0 0.0
  %906 = vmatpush1.msra.mxu0 0.0
  %907 = vmatprep.subr.mxu0 0.0
  %908 = vmatpush1.msra.mxu0 0.0
  %909 = vmatprep.subr.mxu0 0.0
  %910 = vmatpush1.msra.mxu0 0.0
  %911 = vmatprep.subr.mxu0 0.0
  %912 = vmatpush1.msra.mxu0 0.0
  %913 = vmatprep.subr.mxu0 0.0
  %914 = vmatpush1.msra.mxu0 0.0
  %915 = vmatprep.subr.mxu0 0.0
  %916 = vmatpush1.msra.mxu0 0.0
  %917 = vmatprep.subr.mxu0 0.0
  %918 = vmatpush1.msra.mxu0 0.0
  %919 = vmatprep.subr.mxu0 0.0
  %920 = vmatpush1.msra.mxu0 0.0
  %921 = vmatprep.subr.mxu0 0.0
  %922 = vmatpush1.msra.mxu0 0.0
  %923 = vmatprep.subr.mxu0 0.0
  %924 = vmatpush1.msra.mxu0 0.0
  %925 = vmatprep.subr.mxu0 0.0
  %926 = vmatpush1.msra.mxu0 0.0
  %927 = vmatprep.subr.mxu0 0.0
  %928 = vmatpush1.msra.mxu0 0.0
  %929 = vmatprep.subr.mxu0 0.0
  %930 = vmatpush1.msra.mxu0 0.0
  %931 = vmatprep.subr.mxu0 0.0
  %932 = vmatpush1.msra.mxu0 0.0
  %933 = vmatprep.subr.mxu0 0.0
  %934 = vmatpush1.msra.mxu0 0.0
  %935 = vmatprep.mubr.f32.mxu0 0.0
  %936 = vmatmul.mubr.f32.gmra.mrb[0].mxu0 %v22
  %v937 = vpop.f32.mrb[0].mxu0
  %v938 = vadd.f32 0.0, %v937
  %v939 = vpop.f32.mrb[0].mxu0
  %940 = vmatprep.mubr.f32.mxu0 0.0
  %941 = vmatmul.mubr.f32.gmra.mrb[0].mxu0 %v25
  %v942 = vpop.f32.mrb[0].mxu0
  %v943 = vadd.f32 0.0, %v942
  %v944 = vpop.f32.mrb[0].mxu0
  %945 = vdwg.mxu0
  %946 = vmatprep.subr.mxu0 0.0
  %947 = vmatpush1.msra.mxu0 %v869
  %948 = vmatprep.subr.mxu0 0.0
  %949 = vmatpush1.msra.mxu0 %v870
  %950 = vmatprep.subr.mxu0 0.0
  %951 = vmatpush1.msra.mxu0 0.0
  %952 = vmatprep.subr.mxu0 0.0
  %953 = vmatpush1.msra.mxu0 0.0
  %954 = vmatprep.subr.mxu0 0.0
  %955 = vmatpush1.msra.mxu0 0.0
  %956 = vmatprep.subr.mxu0 0.0
  %957 = vmatpush1.msra.mxu0 0.0
  %958 = vmatprep.subr.mxu0 0.0
  %959 = vmatpush1.msra.mxu0 0.0
  %960 = vmatprep.subr.mxu0 0.0
  %961 = vmatpush1.msra.mxu0 0.0
  %962 = vmatprep.subr.mxu0 0.0
  %963 = vmatpush1.msra.mxu0 0.0
  %964 = vmatprep.subr.mxu0 0.0
  %965 = vmatpush1.msra.mxu0 0.0
  %966 = vmatprep.subr.mxu0 0.0
  %967 = vmatpush1.msra.mxu0 0.0
  %968 = vmatprep.subr.mxu0 0.0
  %969 = vmatpush1.msra.mxu0 0.0
  %970 = vmatprep.subr.mxu0 0.0
  %971 = vmatpush1.msra.mxu0 0.0
  %972 = vmatprep.subr.mxu0 0.0
  %973 = vmatpush1.msra.mxu0 0.0
  %974 = vmatprep.subr.mxu0 0.0
  %975 = vmatpush1.msra.mxu0 0.0
  %976 = vmatprep.subr.mxu0 0.0
  %977 = vmatpush1.msra.mxu0 0.0
  %978 = vmatprep.subr.mxu0 0.0
  %979 = vmatpush1.msra.mxu0 0.0
  %980 = vmatprep.subr.mxu0 0.0
  %981 = vmatpush1.msra.mxu0 0.0
  %982 = vmatprep.subr.mxu0 0.0
  %983 = vmatpush1.msra.mxu0 0.0
  %984 = vmatprep.subr.mxu0 0.0
  %985 = vmatpush1.msra.mxu0 0.0
  %986 = vmatprep.subr.mxu0 0.0
  %987 = vmatpush1.msra.mxu0 0.0
  %988 = vmatprep.subr.mxu0 0.0
  %989 = vmatpush1.msra.mxu0 0.0
  %990 = vmatprep.subr.mxu0 0.0
  %991 = vmatpush1.msra.mxu0 0.0
  %992 = vmatprep.subr.mxu0 0.0
  %993 = vmatpush1.msra.mxu0 0.0
  %994 = vmatprep.subr.mxu0 0.0
  %995 = vmatpush1.msra.mxu0 0.0
  %996 = vmatprep.subr.mxu0 0.0
  %997 = vmatpush1.msra.mxu0 0.0
  %998 = vmatprep.subr.mxu0 0.0
  %999 = vmatpush1.msra.mxu0 0.0
  %1000 = vmatprep.subr.mxu0 0.0
  %1001 = vmatpush1.msra.mxu0 0.0
  %1002 = vmatprep.subr.mxu0 0.0
  %1003 = vmatpush1.msra.mxu0 0.0
  %1004 = vmatprep.subr.mxu0 0.0
  %1005 = vmatpush1.msra.mxu0 0.0
  %1006 = vmatprep.subr.mxu0 0.0
  %1007 = vmatpush1.msra.mxu0 0.0
  %1008 = vmatprep.subr.mxu0 0.0
  %1009 = vmatpush1.msra.mxu0 0.0
  %1010 = vmatprep.mubr.f32.mxu0 0.0
  %1011 = vmatmul.mubr.f32.gmra.mrb[0].mxu0 %v103
  %v1012 = vpop.f32.mrb[0].mxu0
  %v1013 = vadd.f32 0.0, %v1012
  %v1014 = vpop.f32.mrb[0].mxu0
  %1015 = vmatprep.mubr.f32.mxu0 0.0
  %1016 = vmatmul.mubr.f32.gmra.mrb[0].mxu0 %v106
  %v1017 = vpop.f32.mrb[0].mxu0
  %v1018 = vadd.f32 0.0, %v1017
  %v1019 = vpop.f32.mrb[0].mxu0
  %1020 = vdwg.mxu0
  %s1021 = scalar_lea.vmem %s3, %s867
  %1022 = vst [vmem:[%s1021] sm:$0xff] %v938
  %1023 = vst [vmem:[%s1021 + $0x8] sm:$0xff] %v943
  %s1024 = scalar_lea.vmem [#allocation2], 80
  %1025 = vst [vmem:[%s1024] sm:$0xff] %v1013
  %1026 = vst [vmem:[%s1024 + $0x8] sm:$0xff] %v1018
  %v1027 = vmul.f32 %v938, %v1013
  %v1028 = vmul.f32 %v943, %v1018
  %v1029 = vadd.f32 %v861, %v1027
  %v1030 = vadd.f32 %v862, %v1028
  %v1031 = vmul.f32 %v1013, %v1013
  %v1032 = vmul.f32 %v1018, %v1018
  %v1033 = vadd.f32 %v865, %v1031
  %v1034 = vadd.f32 %v866, %v1032
  %s1035 = sadd.s32 0, 96
  %s1036 = scalar_lea.vmem %s0, %s1035
  %v1037 = vld [vmem:[%s1036] sm:$0xff]
  %v1038 = vld [vmem:[%s1036 + $0x8] sm:$0xff]
  %1039 = vmatprep.subr.mxu0 0.0
  %1040 = vmatpush1.msra.mxu0 %v1037
  %1041 = vmatprep.subr.mxu0 0.0
  %1042 = vmatpush1.msra.mxu0 %v1038
  %1043 = vmatprep.subr.mxu0 0.0
  %1044 = vmatpush1.msra.mxu0 0.0
  %1045 = vmatprep.subr.mxu0 0.0
  %1046 = vmatpush1.msra.mxu0 0.0
  %1047 = vmatprep.subr.mxu0 0.0
  %1048 = vmatpush1.msra.mxu0 0.0
  %1049 = vmatprep.subr.mxu0 0.0
  %1050 = vmatpush1.msra.mxu0 0.0
  %1051 = vmatprep.subr.mxu0 0.0
  %1052 = vmatpush1.msra.mxu0 0.0
  %1053 = vmatprep.subr.mxu0 0.0
  %1054 = vmatpush1.msra.mxu0 0.0
  %1055 = vmatprep.subr.mxu0 0.0
  %1056 = vmatpush1.msra.mxu0 0.0
  %1057 = vmatprep.subr.mxu0 0.0
  %1058 = vmatpush1.msra.mxu0 0.0
  %1059 = vmatprep.subr.mxu0 0.0
  %1060 = vmatpush1.msra.mxu0 0.0
  %1061 = vmatprep.subr.mxu0 0.0
  %1062 = vmatpush1.msra.mxu0 0.0
  %1063 = vmatprep.subr.mxu0 0.0
  %1064 = vmatpush1.msra.mxu0 0.0
  %1065 = vmatprep.subr.mxu0 0.0
  %1066 = vmatpush1.msra.mxu0 0.0
  %1067 = vmatprep.subr.mxu0 0.0
  %1068 = vmatpush1.msra.mxu0 0.0
  %1069 = vmatprep.subr.mxu0 0.0
  %1070 = vmatpush1.msra.mxu0 0.0
  %1071 = vmatprep.subr.mxu0 0.0
  %1072 = vmatpush1.msra.mxu0 0.0
  %1073 = vmatprep.subr.mxu0 0.0
  %1074 = vmatpush1.msra.mxu0 0.0
  %1075 = vmatprep.subr.mxu0 0.0
  %1076 = vmatpush1.msra.mxu0 0.0
  %1077 = vmatprep.subr.mxu0 0.0
  %1078 = vmatpush1.msra.mxu0 0.0
  %1079 = vmatprep.subr.mxu0 0.0
  %1080 = vmatpush1.msra.mxu0 0.0
  %1081 = vmatprep.subr.mxu0 0.0
  %1082 = vmatpush1.msra.mxu0 0.0
  %1083 = vmatprep.subr.mxu0 0.0
  %1084 = vmatpush1.msra.mxu0 0.0
  %1085 = vmatprep.subr.mxu0 0.0
  %1086 = vmatpush1.msra.mxu0 0.0
  %1087 = vmatprep.subr.mxu0 0.0
  %1088 = vmatpush1.msra.mxu0 0.0
  %1089 = vmatprep.subr.mxu0 0.0
  %1090 = vmatpush1.msra.mxu0 0.0
  %1091 = vmatprep.subr.mxu0 0.0
  %1092 = vmatpush1.msra.mxu0 0.0
  %1093 = vmatprep.subr.mxu0 0.0
  %1094 = vmatpush1.msra.mxu0 0.0
  %1095 = vmatprep.subr.mxu0 0.0
  %1096 = vmatpush1.msra.mxu0 0.0
  %1097 = vmatprep.subr.mxu0 0.0
  %1098 = vmatpush1.msra.mxu0 0.0
  %1099 = vmatprep.subr.mxu0 0.0
  %1100 = vmatpush1.msra.mxu0 0.0
  %1101 = vmatprep.subr.mxu0 0.0
  %1102 = vmatpush1.msra.mxu0 0.0
  %1103 = vmatprep.mubr.f32.mxu0 0.0
  %1104 = vmatmul.mubr.f32.gmra.mrb[0].mxu0 %v22
  %v1105 = vpop.f32.mrb[0].mxu0
  %v1106 = vadd.f32 0.0, %v1105
  %v1107 = vpop.f32.mrb[0].mxu0
  %1108 = vmatprep.mubr.f32.mxu0 0.0
  %1109 = vmatmul.mubr.f32.gmra.mrb[0].mxu0 %v25
  %v1110 = vpop.f32.mrb[0].mxu0
  %v1111 = vadd.f32 0.0, %v1110
  %v1112 = vpop.f32.mrb[0].mxu0
  %1113 = vdwg.mxu0
  %1114 = vmatprep.subr.mxu0 0.0
  %1115 = vmatpush1.msra.mxu0 %v1037
  %1116 = vmatprep.subr.mxu0 0.0
  %1117 = vmatpush1.msra.mxu0 %v1038
  %1118 = vmatprep.subr.mxu0 0.0
  %1119 = vmatpush1.msra.mxu0 0.0
  %1120 = vmatprep.subr.mxu0 0.0
  %1121 = vmatpush1.msra.mxu0 0.0
  %1122 = vmatprep.subr.mxu0 0.0
  %1123 = vmatpush1.msra.mxu0 0.0
  %1124 = vmatprep.subr.mxu0 0.0
  %1125 = vmatpush1.msra.mxu0 0.0
  %1126 = vmatprep.subr.mxu0 0.0
  %1127 = vmatpush1.msra.mxu0 0.0
  %1128 = vmatprep.subr.mxu0 0.0
  %1129 = vmatpush1.msra.mxu0 0.0
  %1130 = vmatprep.subr.mxu0 0.0
  %1131 = vmatpush1.msra.mxu0 0.0
  %1132 = vmatprep.subr.mxu0 0.0
  %1133 = vmatpush1.msra.mxu0 0.0
  %1134 = vmatprep.subr.mxu0 0.0
  %1135 = vmatpush1.msra.mxu0 0.0
  %1136 = vmatprep.subr.mxu0 0.0
  %1137 = vmatpush1.msra.mxu0 0.0
  %1138 = vmatprep.subr.mxu0 0.0
  %1139 = vmatpush1.msra.mxu0 0.0
  %1140 = vmatprep.subr.mxu0 0.0
  %1141 = vmatpush1.msra.mxu0 0.0
  %1142 = vmatprep.subr.mxu0 0.0
  %1143 = vmatpush1.msra.mxu0 0.0
  %1144 = vmatprep.subr.mxu0 0.0
  %1145 = vmatpush1.msra.mxu0 0.0
  %1146 = vmatprep.subr.mxu0 0.0
  %1147 = vmatpush1.msra.mxu0 0.0
  %1148 = vmatprep.subr.mxu0 0.0
  %1149 = vmatpush1.msra.mxu0 0.0
  %1150 = vmatprep.subr.mxu0 0.0
  %1151 = vmatpush1.msra.mxu0 0.0
  %1152 = vmatprep.subr.mxu0 0.0
  %1153 = vmatpush1.msra.mxu0 0.0
  %1154 = vmatprep.subr.mxu0 0.0
  %1155 = vmatpush1.msra.mxu0 0.0
  %1156 = vmatprep.subr.mxu0 0.0
  %1157 = vmatpush1.msra.mxu0 0.0
  %1158 = vmatprep.subr.mxu0 0.0
  %1159 = vmatpush1.msra.mxu0 0.0
  %1160 = vmatprep.subr.mxu0 0.0
  %1161 = vmatpush1.msra.mxu0 0.0
  %1162 = vmatprep.subr.mxu0 0.0
  %1163 = vmatpush1.msra.mxu0 0.0
  %1164 = vmatprep.subr.mxu0 0.0
  %1165 = vmatpush1.msra.mxu0 0.0
  %1166 = vmatprep.subr.mxu0 0.0
  %1167 = vmatpush1.msra.mxu0 0.0
  %1168 = vmatprep.subr.mxu0 0.0
  %1169 = vmatpush1.msra.mxu0 0.0
  %1170 = vmatprep.subr.mxu0 0.0
  %1171 = vmatpush1.msra.mxu0 0.0
  %1172 = vmatprep.subr.mxu0 0.0
  %1173 = vmatpush1.msra.mxu0 0.0
  %1174 = vmatprep.subr.mxu0 0.0
  %1175 = vmatpush1.msra.mxu0 0.0
  %1176 = vmatprep.subr.mxu0 0.0
  %1177 = vmatpush1.msra.mxu0 0.0
  %1178 = vmatprep.mubr.f32.mxu0 0.0
  %1179 = vmatmul.mubr.f32.gmra.mrb[0].mxu0 %v103
  %v1180 = vpop.f32.mrb[0].mxu0
  %v1181 = vadd.f32 0.0, %v1180
  %v1182 = vpop.f32.mrb[0].mxu0
  %1183 = vmatprep.mubr.f32.mxu0 0.0
  %1184 = vmatmul.mubr.f32.gmra.mrb[0].mxu0 %v106
  %v1185 = vpop.f32.mrb[0].mxu0
  %v1186 = vadd.f32 0.0, %v1185
  %v1187 = vpop.f32.mrb[0].mxu0
  %1188 = vdwg.mxu0
  %s1189 = scalar_lea.vmem %s3, %s1035
  %1190 = vst [vmem:[%s1189] sm:$0xff] %v1106
  %1191 = vst [vmem:[%s1189 + $0x8] sm:$0xff] %v1111
  %s1192 = scalar_lea.vmem [#allocation2], 96
  %1193 = vst [vmem:[%s1192] sm:$0xff] %v1181
  %1194 = vst [vmem:[%s1192 + $0x8] sm:$0xff] %v1186
  %v1195 = vmul.f32 %v1106, %v1181
  %v1196 = vmul.f32 %v1111, %v1186
  %v1197 = vadd.f32 %v1029, %v1195
  %v1198 = vadd.f32 %v1030, %v1196
  %v1199 = vmul.f32 %v1181, %v1181
  %v1200 = vmul.f32 %v1186, %v1186
  %v1201 = vadd.f32 %v1033, %v1199
  %v1202 = vadd.f32 %v1034, %v1200
  %s1203 = sadd.s32 0, 112
  %s1204 = scalar_lea.vmem %s0, %s1203
  %v1205 = vld [vmem:[%s1204] sm:$0xff]
  %v1206 = vld [vmem:[%s1204 + $0x8] sm:$0xff]
  %1207 = vmatprep.subr.mxu0 0.0
  %1208 = vmatpush1.msra.mxu0 %v1205
  %1209 = vmatprep.subr.mxu0 0.0
  %1210 = vmatpush1.msra.mxu0 %v1206
  %1211 = vmatprep.subr.mxu0 0.0
  %1212 = vmatpush1.msra.mxu0 0.0
  %1213 = vmatprep.subr.mxu0 0.0
  %1214 = vmatpush1.msra.mxu0 0.0
  %1215 = vmatprep.subr.mxu0 0.0
  %1216 = vmatpush1.msra.mxu0 0.0
  %1217 = vmatprep.subr.mxu0 0.0
  %1218 = vmatpush1.msra.mxu0 0.0
  %1219 = vmatprep.subr.mxu0 0.0
  %1220 = vmatpush1.msra.mxu0 0.0
  %1221 = vmatprep.subr.mxu0 0.0
  %1222 = vmatpush1.msra.mxu0 0.0
  %1223 = vmatprep.subr.mxu0 0.0
  %1224 = vmatpush1.msra.mxu0 0.0
  %1225 = vmatprep.subr.mxu0 0.0
  %1226 = vmatpush1.msra.mxu0 0.0
  %1227 = vmatprep.subr.mxu0 0.0
  %1228 = vmatpush1.msra.mxu0 0.0
  %1229 = vmatprep.subr.mxu0 0.0
  %1230 = vmatpush1.msra.mxu0 0.0
  %1231 = vmatprep.subr.mxu0 0.0
  %1232 = vmatpush1.msra.mxu0 0.0
  %1233 = vmatprep.subr.mxu0 0.0
  %1234 = vmatpush1.msra.mxu0 0.0
  %1235 = vmatprep.subr.mxu0 0.0
  %1236 = vmatpush1.msra.mxu0 0.0
  %1237 = vmatprep.subr.mxu0 0.0
  %1238 = vmatpush1.msra.mxu0 0.0
  %1239 = vmatprep.subr.mxu0 0.0
  %1240 = vmatpush1.msra.mxu0 0.0
  %1241 = vmatprep.subr.mxu0 0.0
  %1242 = vmatpush1.msra.mxu0 0.0
  %1243 = vmatprep.subr.mxu0 0.0
  %1244 = vmatpush1.msra.mxu0 0.0
  %1245 = vmatprep.subr.mxu0 0.0
  %1246 = vmatpush1.msra.mxu0 0.0
  %1247 = vmatprep.subr.mxu0 0.0
  %1248 = vmatpush1.msra.mxu0 0.0
  %1249 = vmatprep.subr.mxu0 0.0
  %1250 = vmatpush1.msra.mxu0 0.0
  %1251 = vmatprep.subr.mxu0 0.0
  %1252 = vmatpush1.msra.mxu0 0.0
  %1253 = vmatprep.subr.mxu0 0.0
  %1254 = vmatpush1.msra.mxu0 0.0
  %1255 = vmatprep.subr.mxu0 0.0
  %1256 = vmatpush1.msra.mxu0 0.0
  %1257 = vmatprep.subr.mxu0 0.0
  %1258 = vmatpush1.msra.mxu0 0.0
  %1259 = vmatprep.subr.mxu0 0.0
  %1260 = vmatpush1.msra.mxu0 0.0
  %1261 = vmatprep.subr.mxu0 0.0
  %1262 = vmatpush1.msra.mxu0 0.0
  %1263 = vmatprep.subr.mxu0 0.0
  %1264 = vmatpush1.msra.mxu0 0.0
  %1265 = vmatprep.subr.mxu0 0.0
  %1266 = vmatpush1.msra.mxu0 0.0
  %1267 = vmatprep.subr.mxu0 0.0
  %1268 = vmatpush1.msra.mxu0 0.0
  %1269 = vmatprep.subr.mxu0 0.0
  %1270 = vmatpush1.msra.mxu0 0.0
  %1271 = vmatprep.mubr.f32.mxu0 0.0
  %1272 = vmatmul.mubr.f32.gmra.mrb[0].mxu0 %v22
  %v1273 = vpop.f32.mrb[0].mxu0
  %v1274 = vadd.f32 0.0, %v1273
  %v1275 = vpop.f32.mrb[0].mxu0
  %1276 = vmatprep.mubr.f32.mxu0 0.0
  %1277 = vmatmul.mubr.f32.gmra.mrb[0].mxu0 %v25
  %v1278 = vpop.f32.mrb[0].mxu0
  %v1279 = vadd.f32 0.0, %v1278
  %v1280 = vpop.f32.mrb[0].mxu0
  %1281 = vdwg.mxu0
  %1282 = vmatprep.subr.mxu0 0.0
  %1283 = vmatpush1.msra.mxu0 %v1205
  %1284 = vmatprep.subr.mxu0 0.0
  %1285 = vmatpush1.msra.mxu0 %v1206
  %1286 = vmatprep.subr.mxu0 0.0
  %1287 = vmatpush1.msra.mxu0 0.0
  %1288 = vmatprep.subr.mxu0 0.0
  %1289 = vmatpush1.msra.mxu0 0.0
  %1290 = vmatprep.subr.mxu0 0.0
  %1291 = vmatpush1.msra.mxu0 0.0
  %1292 = vmatprep.subr.mxu0 0.0
  %1293 = vmatpush1.msra.mxu0 0.0
  %1294 = vmatprep.subr.mxu0 0.0
  %1295 = vmatpush1.msra.mxu0 0.0
  %1296 = vmatprep.subr.mxu0 0.0
  %1297 = vmatpush1.msra.mxu0 0.0
  %1298 = vmatprep.subr.mxu0 0.0
  %1299 = vmatpush1.msra.mxu0 0.0
  %1300 = vmatprep.subr.mxu0 0.0
  %1301 = vmatpush1.msra.mxu0 0.0
  %1302 = vmatprep.subr.mxu0 0.0
  %1303 = vmatpush1.msra.mxu0 0.0
  %1304 = vmatprep.subr.mxu0 0.0
  %1305 = vmatpush1.msra.mxu0 0.0
  %1306 = vmatprep.subr.mxu0 0.0
  %1307 = vmatpush1.msra.mxu0 0.0
  %1308 = vmatprep.subr.mxu0 0.0
  %1309 = vmatpush1.msra.mxu0 0.0
  %1310 = vmatprep.subr.mxu0 0.0
  %1311 = vmatpush1.msra.mxu0 0.0
  %1312 = vmatprep.subr.mxu0 0.0
  %1313 = vmatpush1.msra.mxu0 0.0
  %1314 = vmatprep.subr.mxu0 0.0
  %1315 = vmatpush1.msra.mxu0 0.0
  %1316 = vmatprep.subr.mxu0 0.0
  %1317 = vmatpush1.msra.mxu0 0.0
  %1318 = vmatprep.subr.mxu0 0.0
  %1319 = vmatpush1.msra.mxu0 0.0
  %1320 = vmatprep.subr.mxu0 0.0
  %1321 = vmatpush1.msra.mxu0 0.0
  %1322 = vmatprep.subr.mxu0 0.0
  %1323 = vmatpush1.msra.mxu0 0.0
  %1324 = vmatprep.subr.mxu0 0.0
  %1325 = vmatpush1.msra.mxu0 0.0
  %1326 = vmatprep.subr.mxu0 0.0
  %1327 = vmatpush1.msra.mxu0 0.0
  %1328 = vmatprep.subr.mxu0 0.0
  %1329 = vmatpush1.msra.mxu0 0.0
  %1330 = vmatprep.subr.mxu0 0.0
  %1331 = vmatpush1.msra.mxu0 0.0
  %1332 = vmatprep.subr.mxu0 0.0
  %1333 = vmatpush1.msra.mxu0 0.0
  %1334 = vmatprep.subr.mxu0 0.0
  %1335 = vmatpush1.msra.mxu0 0.0
  %1336 = vmatprep.subr.mxu0 0.0
  %1337 = vmatpush1.msra.mxu0 0.0
  %1338 = vmatprep.subr.mxu0 0.0
  %1339 = vmatpush1.msra.mxu0 0.0
  %1340 = vmatprep.subr.mxu0 0.0
  %1341 = vmatpush1.msra.mxu0 0.0
  %1342 = vmatprep.subr.mxu0 0.0
  %1343 = vmatpush1.msra.mxu0 0.0
  %1344 = vmatprep.subr.mxu0 0.0
  %1345 = vmatpush1.msra.mxu0 0.0
  %1346 = vmatprep.mubr.f32.mxu0 0.0
  %1347 = vmatmul.mubr.f32.gmra.mrb[0].mxu0 %v103
  %v1348 = vpop.f32.mrb[0].mxu0
  %v1349 = vadd.f32 0.0, %v1348
  %v1350 = vpop.f32.mrb[0].mxu0
  %1351 = vmatprep.mubr.f32.mxu0 0.0
  %1352 = vmatmul.mubr.f32.gmra.mrb[0].mxu0 %v106
  %v1353 = vpop.f32.mrb[0].mxu0
  %v1354 = vadd.f32 0.0, %v1353
  %v1355 = vpop.f32.mrb[0].mxu0
  %1356 = vdwg.mxu0
  %s1357 = scalar_lea.vmem %s3, %s1203
  %1358 = vst [vmem:[%s1357] sm:$0xff] %v1274
  %1359 = vst [vmem:[%s1357 + $0x8] sm:$0xff] %v1279
  %s1360 = scalar_lea.vmem [#allocation2], 112
  %1361 = vst [vmem:[%s1360] sm:$0xff] %v1349
  %1362 = vst [vmem:[%s1360 + $0x8] sm:$0xff] %v1354
  %v1363 = vmul.f32 %v1274, %v1349
  %v1364 = vmul.f32 %v1279, %v1354
  %v1365 = vadd.f32 %v1197, %v1363
  %v1366 = vadd.f32 %v1198, %v1364
  %v1367 = vmul.f32 %v1349, %v1349
  %v1368 = vmul.f32 %v1354, %v1354
  %v1369 = vadd.f32 %v1201, %v1367
  %v1370 = vadd.f32 %v1202, %v1368
  %v1371 = vrcp.pop %v1369
  %v1372 = vrcp.pop %v1370
  %v1373 = vmul.f32 %v1369, %v1371
  %v1374 = vmul.f32 %v1370, %v1372
  %v1375 = vsub.f32 2.0, %v1373
  %v1376 = vsub.f32 2.0, %v1374
  %v1377 = vmul.f32 %v1371, %v1375
  %v1378 = vmul.f32 %v1372, %v1376
  %vm1379 = vcmp.gt.f32.partialorder %v1365, 0.0
  %vm1380 = vcmp.gt.f32.partialorder %v1366, 0.0
  %v1381 = vmul.f32 %v1365, %v1377
  %v1382 = vmul.f32 %v1366, %v1378
  %v1383 = vsel %vm1379, 0.0, %v1381
  %v1384 = vsel %vm1380, 0.0, %v1382
  %v1385 = vld [vmem:[%s3] sm:$0xff]
  %v1386 = vld [vmem:[%s3 + $0x8] sm:$0xff]
  %v1387 = vld [vmem:[#allocation2] sm:$0xff]
  %v1388 = vld [vmem:[#allocation2 + $0x8] sm:$0xff]
  %v1389 = vmul.f32 %v1383, %v1387
  %v1390 = vmul.f32 %v1384, %v1388
  %v1391 = vsub.f32 %v1385, %v1389
  %v1392 = vsub.f32 %v1386, %v1390
  %1393 = vst [vmem:[%s3] sm:$0xff] %v1391
  %1394 = vst [vmem:[%s3 + $0x8] sm:$0xff] %v1392
  %v1395 = vld [vmem:[%s349] sm:$0xff]
  %v1396 = vld [vmem:[%s349 + $0x8] sm:$0xff]
  %v1397 = vld [vmem:[%s352] sm:$0xff]
  %v1398 = vld [vmem:[%s352 + $0x8] sm:$0xff]
  %v1399 = vmul.f32 %v1383, %v1397
  %v1400 = vmul.f32 %v1384, %v1398
  %v1401 = vsub.f32 %v1395, %v1399
  %v1402 = vsub.f32 %v1396, %v1400
  %1403 = vst [vmem:[%s349] sm:$0xff] %v1401
  %1404 = vst [vmem:[%s349 + $0x8] sm:$0xff] %v1402
  %v1405 = vld [vmem:[%s517] sm:$0xff]
  %v1406 = vld [vmem:[%s517 + $0x8] sm:$0xff]
  %v1407 = vld [vmem:[%s520] sm:$0xff]
  %v1408 = vld [vmem:[%s520 + $0x8] sm:$0xff]
  %v1409 = vmul.f32 %v1383, %v1407
  %v1410 = vmul.f32 %v1384, %v1408
  %v1411 = vsub.f32 %v1405, %v1409
  %v1412 = vsub.f32 %v1406, %v1410
  %1413 = vst [vmem:[%s517] sm:$0xff] %v1411
  %1414 = vst [vmem:[%s517 + $0x8] sm:$0xff] %v1412
  %v1415 = vld [vmem:[%s685] sm:$0xff]
  %v1416 = vld [vmem:[%s685 + $0x8] sm:$0xff]
  %v1417 = vld [vmem:[%s688] sm:$0xff]
  %v1418 = vld [vmem:[%s688 + $0x8] sm:$0xff]
  %v1419 = vmul.f32 %v1383, %v1417
  %v1420 = vmul.f32 %v1384, %v1418
  %v1421 = vsub.f32 %v1415, %v1419
  %v1422 = vsub.f32 %v1416, %v1420
  %1423 = vst [vmem:[%s685] sm:$0xff] %v1421
  %1424 = vst [vmem:[%s685 + $0x8] sm:$0xff] %v1422
  %v1425 = vld [vmem:[%s853] sm:$0xff]
  %v1426 = vld [vmem:[%s853 + $0x8] sm:$0xff]
  %v1427 = vld [vmem:[%s856] sm:$0xff]
  %v1428 = vld [vmem:[%s856 + $0x8] sm:$0xff]
  %v1429 = vmul.f32 %v1383, %v1427
  %v1430 = vmul.f32 %v1384, %v1428
  %v1431 = vsub.f32 %v1425, %v1429
  %v1432 = vsub.f32 %v1426, %v1430
  %1433 = vst [vmem:[%s853] sm:$0xff] %v1431
  %1434 = vst [vmem:[%s853 + $0x8] sm:$0xff] %v1432
  %v1435 = vld [vmem:[%s1021] sm:$0xff]
  %v1436 = vld [vmem:[%s1021 + $0x8] sm:$0xff]
  %v1437 = vld [vmem:[%s1024] sm:$0xff]
  %v1438 = vld [vmem:[%s1024 + $0x8] sm:$0xff]
  %v1439 = vmul.f32 %v1383, %v1437
  %v1440 = vmul.f32 %v1384, %v1438
  %v1441 = vsub.f32 %v1435, %v1439
  %v1442 = vsub.f32 %v1436, %v1440
  %1443 = vst [vmem:[%s1021] sm:$0xff] %v1441
  %1444 = vst [vmem:[%s1021 + $0x8] sm:$0xff] %v1442
  %v1445 = vld [vmem:[%s1189] sm:$0xff]
  %v1446 = vld [vmem:[%s1189 + $0x8] sm:$0xff]
  %v1447 = vld [vmem:[%s1192] sm:$0xff]
  %v1448 = vld [vmem:[%s1192 + $0x8] sm:$0xff]
  %v1449 = vmul.f32 %v1383, %v1447
  %v1450 = vmul.f32 %v1384, %v1448
  %v1451 = vsub.f32 %v1445, %v1449
  %v1452 = vsub.f32 %v1446, %v1450
  %1453 = vst [vmem:[%s1189] sm:$0xff] %v1451
  %1454 = vst [vmem:[%s1189 + $0x8] sm:$0xff] %v1452
  %v1455 = vld [vmem:[%s1357] sm:$0xff]
  %v1456 = vld [vmem:[%s1357 + $0x8] sm:$0xff]
  %v1457 = vld [vmem:[%s1360] sm:$0xff]
  %v1458 = vld [vmem:[%s1360 + $0x8] sm:$0xff]
  %v1459 = vmul.f32 %v1383, %v1457
  %v1460 = vmul.f32 %v1384, %v1458
  %v1461 = vsub.f32 %v1455, %v1459
  %v1462 = vsub.f32 %v1456, %v1460
  %1463 = vst [vmem:[%s1357] sm:$0xff] %v1461
  %1464 = vst [vmem:[%s1357 + $0x8] sm:$0xff] %v1462
  // Predicated region
  $region14: #{mvact_blades_major.1} parent=0 // pred_check
    _
  $region15: #{mvact_blades_major.1} parent=0 // pred_check_branch
    %1466 = sbr.rel (0) target = $region17
  $region16: #{mvact_blades_major.1} parent=0 // pred_region
    _
  $region17: #{mvact_blades_major.1} parent=0 // pred_fallthru
    _
  // Predicated region
  $region18: #{mvact_blades_major.1} parent=0 // pred_check
    _
  $region19: #{mvact_blades_major.1} parent=0 // pred_check_branch
    %1468 = sbr.rel (0) target = $region21
  $region20: #{mvact_blades_major.1} parent=0 // pred_region
    _
  $region21: #{mvact_blades_major.1} parent=0 // pred_fallthru
    _

</llo_original>
